<compile_context>
chip_gen: v7x
topology: tpu7x:2x2x1
jax: 0.10.0
libtpu: 0.0.40
codegen_flags: <defaults>
</compile_context>

<pallas_src>
import math
from functools import partial

import jax
import jax.numpy as jnp
from jax.experimental import pallas as pl
from jax.experimental.pallas import tpu as pltpu


# ---------------------------------------------------------------------------
# Tile helper: largest multiple of `align` that is <= pref and divides dim,
# else fall back to the full dimension (keeps (8,128) rules satisfied).
# ---------------------------------------------------------------------------
_TM, _TN, _TK = 256, 256, 512


def _pick_tile(dim, pref, align):
    if dim <= pref:
        return dim
    t = (pref // align) * align
    while t >= align:
        if dim % t == 0:
            return t
        t -= align
    return dim


# ---------------------------------------------------------------------------
# Kernels
# ---------------------------------------------------------------------------

def _ln_linear_kernel(x_ref, g_ref, b_ref, w_ref, bias_ref, o_ref, *, relu):
    """Fused LayerNorm(d_model) -> Linear (+ optional ReLU) on a row tile."""
    x = x_ref[...].astype(jnp.float32)
    mean = jnp.mean(x, axis=-1, keepdims=True)
    var = jnp.mean((x - mean) ** 2, axis=-1, keepdims=True)
    xn = (x - mean) * jax.lax.rsqrt(var + 1e-5)
    xn = xn * g_ref[...] + b_ref[...]
    y = jnp.dot(xn, w_ref[...], preferred_element_type=jnp.float32) + bias_ref[...]
    if relu:
        y = jnp.maximum(y, 0.0)
    o_ref[...] = y.astype(o_ref.dtype)


def _linear_residual_kernel(h_ref, w_ref, bias_ref, res_ref, o_ref, acc_ref):
    """Tiled matmul with f32 VMEM accumulator, fused bias + residual add."""
    @pl.when(pl.program_id(2) == 0)
    def _():
        acc_ref[...] = jnp.zeros_like(acc_ref)

    acc_ref[...] += jnp.dot(h_ref[...], w_ref[...],
                            preferred_element_type=jnp.float32)

    @pl.when(pl.program_id(2) == pl.num_programs(2) - 1)
    def _():
        y = acc_ref[...] + bias_ref[...] + res_ref[...].astype(jnp.float32)
        o_ref[...] = y.astype(o_ref.dtype)


def _attention_kernel(qkv_ref, bias_ref, o_ref, *, n_heads, d_model, scale):
    """All heads of one batch element.

    qkv block: (S, 3*D) — [Q | K | V] packed along lanes.
    bias block: (S, S) additive mask bias (-1e6 where masked).
    out block : (S, D) — heads concatenated (single lane-dense store).
    """
    dph = d_model // n_heads
    qkv = qkv_ref[...].astype(jnp.float32)
    bias = bias_ref[...]
    outs = []
    for h in range(n_heads):            # static unroll over heads
        q = qkv[:, h * dph:(h + 1) * dph]
        k = qkv[:, d_model + h * dph:d_model + (h + 1) * dph]
        v = qkv[:, 2 * d_model + h * dph:2 * d_model + (h + 1) * dph]
        # q @ k^T via dot_general contracting the last axes (no explicit k.T).
        s = jax.lax.dot_general(q, k, (((1,), (1,)), ((), ())),
                                preferred_element_type=jnp.float32)
        s = s * scale + bias
        s = s - jnp.max(s, axis=-1, keepdims=True)
        p = jnp.exp(s)
        inv_l = pl.reciprocal(jnp.sum(p, axis=-1, keepdims=True), approx=True)
        outs.append(jnp.dot(p, v, preferred_element_type=jnp.float32) * inv_l)
    o_ref[...] = jnp.concatenate(outs, axis=-1).astype(o_ref.dtype)


# ---------------------------------------------------------------------------
# pallas_call wrappers
# ---------------------------------------------------------------------------

def ln_linear(x, gamma, beta, w, bias, relu=False):
    """x: (N, D) -> LayerNorm over D, then @ w (D, Dout) + bias (1, Dout)."""
    N, D = x.shape
    Dout = w.shape[1]
    tm = _pick_tile(N, _TM, 8)
    tn = _pick_tile(Dout, _TN, 128)
    return pl.pallas_call(
        partial(_ln_linear_kernel, relu=relu),
        out_shape=jax.ShapeDtypeStruct((N, Dout), x.dtype),
        grid=(N // tm, Dout // tn),
        in_specs=[
            pl.BlockSpec((tm, D), lambda i, j: (i, 0)),
            pl.BlockSpec((1, D), lambda i, j: (0, 0)),
            pl.BlockSpec((1, D), lambda i, j: (0, 0)),
            pl.BlockSpec((D, tn), lambda i, j: (0, j)),
            pl.BlockSpec((1, tn), lambda i, j: (0, j)),
        ],
        out_specs=pl.BlockSpec((tm, tn), lambda i, j: (i, j)),
        compiler_params=pltpu.CompilerParams(
            dimension_semantics=("parallel", "parallel")),
    )(x, gamma, beta, w, bias)


def linear_residual(h, w, bias, res):
    """res + (h @ w + bias). h: (N, K), w: (K, Dout), res: (N, Dout)."""
    N, K = h.shape
    Dout = w.shape[1]
    tm = _pick_tile(N, _TM, 8)
    tn = _pick_tile(Dout, _TN, 128)
    tk = _pick_tile(K, _TK, 128)
    return pl.pallas_call(
        _linear_residual_kernel,
        out_shape=jax.ShapeDtypeStruct((N, Dout), res.dtype),
        grid=(N // tm, Dout // tn, K // tk),
        in_specs=[
            pl.BlockSpec((tm, tk), lambda i, j, k: (i, k)),
            pl.BlockSpec((tk, tn), lambda i, j, k: (k, j)),
            pl.BlockSpec((1, tn), lambda i, j, k: (0, j)),
            pl.BlockSpec((tm, tn), lambda i, j, k: (i, j)),
        ],
        out_specs=pl.BlockSpec((tm, tn), lambda i, j, k: (i, j)),
        scratch_shapes=[pltpu.VMEM((tm, tn), jnp.float32)],
        compiler_params=pltpu.CompilerParams(
            dimension_semantics=("parallel", "parallel", "arbitrary")),
    )(h, w, bias, res)


def attention(qkv, mask_bias, n_heads, d_model, seq_len, batch):
    """qkv: (B*S, 3*D) row-major over (b, s); returns (B*S, D)."""
    scale = 1.0 / math.sqrt(d_model // n_heads)
    return pl.pallas_call(
        partial(_attention_kernel, n_heads=n_heads, d_model=d_model, scale=scale),
        out_shape=jax.ShapeDtypeStruct((batch * seq_len, d_model), qkv.dtype),
        grid=(batch,),
        in_specs=[
            pl.BlockSpec((seq_len, 3 * d_model), lambda b: (b, 0)),
            pl.BlockSpec((seq_len, seq_len), lambda b: (0, 0)),
        ],
        out_specs=pl.BlockSpec((seq_len, d_model), lambda b: (b, 0)),
        compiler_params=pltpu.CompilerParams(dimension_semantics=("parallel",)),
    )(qkv, mask_bias)


# ---------------------------------------------------------------------------
# DecoderLayer forward
# ---------------------------------------------------------------------------

def decoder_layer(x, mask, params, n_heads):
    """Forward pass of DecoderLayer. x: (S, B, D), mask: (S, S) 1.0 = hidden."""
    S, B, D = x.shape
    # Single boundary layout change so each batch's tokens are contiguous rows.
    xb = jnp.transpose(x, (1, 0, 2)).reshape(B * S, D)
    mask_bias = (mask * (-1e6)).astype(jnp.float32)

    def mha_block(xf, ln_g, ln_b, p):
        qkv = ln_linear(xf, ln_g, ln_b, p["wqkv"], p["bqkv"])       # LN + fused QKV
        ctx = attention(qkv, mask_bias, n_heads, D, S, B)           # all heads, lane-dense out
        return linear_residual(ctx, p["wo"], p["bo"], xf)           # out-proj + residual

    xb = mha_block(xb, params["ln1_g"], params["ln1_b"], params["mha1"])
    xb = mha_block(xb, params["ln2_g"], params["ln2_b"], params["mha2"])

    h = ln_linear(xb, params["ln3_g"], params["ln3_b"],
                  params["ff"]["w1"], params["ff"]["b1"], relu=True)  # LN + FF1 + ReLU
    xb = linear_residual(h, params["ff"]["w2"], params["ff"]["b2"], xb)  # FF2 + residual

    return jnp.transpose(xb.reshape(B, S, D), (1, 0, 2))


# ---------------------------------------------------------------------------
# Deterministic parameter initialization (Wq|Wk|Wv fused into one weight)
# ---------------------------------------------------------------------------

def init_params(key, d_model, n_heads, linear_layer_size):
    keys = iter(jax.random.split(key, 16))

    def w(din, dout):
        return (0.02 * jax.random.normal(next(keys), (din, dout))).astype(jnp.float32)

    def b(dout):
        return (0.02 * jax.random.normal(next(keys), (1, dout))).astype(jnp.float32)

    def mha_params():
        return dict(
            wqkv=w(d_model, 3 * d_model), bqkv=b(3 * d_model),
            wo=w(d_model, d_model), bo=b(d_model),
        )

    return dict(
        mha1=mha_params(),
        mha2=mha_params(),
        ff=dict(
            w1=w(d_model, linear_layer_size), b1=b(linear_layer_size),
            w2=w(linear_layer_size, d_model), b2=b(d_model),
        ),
        ln1_g=jnp.ones((1, d_model), jnp.float32), ln1_b=jnp.zeros((1, d_model), jnp.float32),
        ln2_g=jnp.ones((1, d_model), jnp.float32), ln2_b=jnp.zeros((1, d_model), jnp.float32),
        ln3_g=jnp.ones((1, d_model), jnp.float32), ln3_b=jnp.zeros((1, d_model), jnp.float32),
    )


# ---------------------------------------------------------------------------
# Pure-JAX reference (mirrors the PyTorch DecoderLayer, eval mode)
# ---------------------------------------------------------------------------

def _reference(x, mask, params, n_heads):
    S, B, D = x.shape
    dph = D // n_heads

    def ln(t, g, b):
        m = jnp.mean(t, -1, keepdims=True)
        v = jnp.mean((t - m) ** 2, -1, keepdims=True)
        return (t - m) / jnp.sqrt(v + 1e-5) * g[0] + b[0]

    def mha(t, p):
        qkv = t @ p["wqkv"] + p["bqkv"]
        q, k, v = jnp.split(qkv, 3, axis=-1)

        def heads(u):
            return jnp.transpose(u.reshape(S, B, n_heads, dph), (2, 1, 0, 3))

        q, k, v = heads(q), heads(k), heads(v)
        s = jnp.einsum("hbqd,hbkd->hbqk", q, k) / math.sqrt(dph)
        s = jnp.where(mask == 1.0, -1e6, s)
        a = jax.nn.softmax(s, axis=-1)
        o = jnp.einsum("hbqk,hbkd->hbqd", a, v)
        o = jnp.transpose(o, (2, 1, 0, 3)).reshape(S, B, D)
        return o @ p["wo"] + p["bo"]

    x2 = ln(x, params["ln1_g"], params["ln1_b"])
    x = x + mha(x2, params["mha1"])
    x2 = ln(x, params["ln2_g"], params["ln2_b"])
    x = x + mha(x2, params["mha2"])
    x2 = ln(x, params["ln3_g"], params["ln3_b"])
    h = jnp.maximum(x2 @ params["ff"]["w1"] + params["ff"]["b1"], 0.0)
    return x + (h @ params["ff"]["w2"] + params["ff"]["b2"])


# ---------------------------------------------------------------------------
# Main
# ---------------------------------------------------------------------------

if __name__ == "__main__":
    SEQ, BATCH, D_MODEL, N_HEADS, FF_SIZE = 8, 2, 32, 4, 64

    key = jax.random.PRNGKey(0)
    k_x, k_p = jax.random.split(key)

    x = jax.random.normal(k_x, (SEQ, BATCH, D_MODEL), dtype=jnp.float32)
    # causal mask: 1.0 where future positions should be hidden
    mask = jnp.triu(jnp.ones((SEQ, SEQ), dtype=jnp.float32), k=1)

    params = init_params(k_p, D_MODEL, N_HEADS, FF_SIZE)

    fwd = jax.jit(partial(decoder_layer, n_heads=N_HEADS))
    out = fwd(x, mask, params)
    jax.block_until_ready(out)

    ref = _reference(x, mask, params, N_HEADS)

    assert out.shape == (SEQ, BATCH, D_MODEL)
    assert bool(jnp.all(jnp.isfinite(out)))
    max_err = float(jnp.max(jnp.abs(out - ref)))
    assert max_err < 1e-3, f"max abs error vs reference: {max_err}"
    print("KERNEL_OK")
</pallas_src>

<mosaic_0001>
module attributes {stable_mosaic.version = 11 : i64} {
  func.func @_ln_linear_kernel(%arg0: i32, %arg1: i32, %arg2: memref<16x32xf32, #tpu.memory_space<vmem>>, %arg3: memref<1x32xf32, #tpu.memory_space<vmem>>, %arg4: memref<1x32xf32, #tpu.memory_space<vmem>>, %arg5: memref<32x96xf32, #tpu.memory_space<vmem>>, %arg6: memref<1x96xf32, #tpu.memory_space<vmem>>, %arg7: memref<16x96xf32, #tpu.memory_space<vmem>>) attributes {dimension_semantics = [#tpu.dimension_semantics<parallel>, #tpu.dimension_semantics<parallel>], iteration_bounds = array<i64: 1, 1>, scalar_prefetch = 0 : i64, scratch_operands = 0 : i64, tpu.core_type = #tpu.core_type<tc>, window_params = [{transform_indices = @transform_0, window_bounds = array<i64: 16, 32>}, {pipeline_mode = #tpu.pipeline_mode<synchronous>, transform_indices = @transform_1, window_bounds = array<i64: 1, 32>}, {pipeline_mode = #tpu.pipeline_mode<synchronous>, transform_indices = @transform_2, window_bounds = array<i64: 1, 32>}, {transform_indices = @transform_3, window_bounds = array<i64: 32, 96>}, {transform_indices = @transform_4, window_bounds = array<i64: 1, 96>}, {transform_indices = @transform_5, window_bounds = array<i64: 16, 96>}]} {
    %c0 = arith.constant 0 : index
    %c0_0 = arith.constant 0 : index
    %0 = vector.load %arg2[%c0, %c0_0] : memref<16x32xf32, #tpu.memory_space<vmem>>, vector<16x32xf32>
    %cst = arith.constant dense<0.000000e+00> : vector<16xf32>
    %1 = vector.multi_reduction <add>, %0, %cst [1] : vector<16x32xf32> to vector<16xf32>
    %2 = vector.shape_cast %1 : vector<16xf32> to vector<16x1xf32>
    %cst_1 = arith.constant 3.200000e+01 : f32
    %3 = vector.broadcast %cst_1 : f32 to vector<16x1xf32>
    %4 = arith.divf %2, %3 : vector<16x1xf32>
    %5 = vector.broadcast %4 : vector<16x1xf32> to vector<16x32xf32>
    %6 = arith.subf %0, %5 : vector<16x32xf32>
    %7 = arith.mulf %6, %6 : vector<16x32xf32>
    %cst_2 = arith.constant dense<0.000000e+00> : vector<16xf32>
    %8 = vector.multi_reduction <add>, %7, %cst_2 [1] : vector<16x32xf32> to vector<16xf32>
    %9 = vector.shape_cast %8 : vector<16xf32> to vector<16x1xf32>
    %cst_3 = arith.constant 3.200000e+01 : f32
    %10 = vector.broadcast %cst_3 : f32 to vector<16x1xf32>
    %11 = arith.divf %9, %10 : vector<16x1xf32>
    %12 = vector.broadcast %4 : vector<16x1xf32> to vector<16x32xf32>
    %13 = arith.subf %0, %12 : vector<16x32xf32>
    %cst_4 = arith.constant 9.99999974E-6 : f32
    %14 = vector.broadcast %cst_4 : f32 to vector<16x1xf32>
    %15 = arith.addf %11, %14 : vector<16x1xf32>
    %16 = math.rsqrt %15 : vector<16x1xf32>
    %17 = vector.broadcast %16 : vector<16x1xf32> to vector<16x32xf32>
    %18 = arith.mulf %13, %17 : vector<16x32xf32>
    %c0_5 = arith.constant 0 : index
    %c0_6 = arith.constant 0 : index
    %19 = vector.load %arg3[%c0_5, %c0_6] : memref<1x32xf32, #tpu.memory_space<vmem>>, vector<1x32xf32>
    %20 = vector.broadcast %19 : vector<1x32xf32> to vector<16x32xf32>
    %21 = arith.mulf %18, %20 : vector<16x32xf32>
    %c0_7 = arith.constant 0 : index
    %c0_8 = arith.constant 0 : index
    %22 = vector.load %arg4[%c0_7, %c0_8] : memref<1x32xf32, #tpu.memory_space<vmem>>, vector<1x32xf32>
    %23 = vector.broadcast %22 : vector<1x32xf32> to vector<16x32xf32>
    %24 = arith.addf %21, %23 : vector<16x32xf32>
    %c0_9 = arith.constant 0 : index
    %c0_10 = arith.constant 0 : index
    %25 = vector.load %arg5[%c0_9, %c0_10] : memref<32x96xf32, #tpu.memory_space<vmem>>, vector<32x96xf32>
    %cst_11 = arith.constant dense<0.000000e+00> : vector<16x96xf32>
    %26 = tpu.matmul %24, %25, %cst_11 {dimension_numbers = #tpu.dot_dimension_numbers<[1], [0], [0], [1], [0, 0, 1, 1], [], []>} : vector<16x32xf32>, vector<32x96xf32>, vector<16x96xf32> -> vector<16x96xf32>
    %c0_12 = arith.constant 0 : index
    %c0_13 = arith.constant 0 : index
    %27 = vector.load %arg6[%c0_12, %c0_13] : memref<1x96xf32, #tpu.memory_space<vmem>>, vector<1x96xf32>
    %28 = vector.broadcast %27 : vector<1x96xf32> to vector<16x96xf32>
    %29 = arith.addf %26, %28 : vector<16x96xf32>
    %c0_14 = arith.constant 0 : index
    %c0_15 = arith.constant 0 : index
    %30 = vector.load %arg7[%c0_14, %c0_15] : memref<16x96xf32, #tpu.memory_space<vmem>>, vector<16x96xf32>
    tpu.vector_store %arg7[%c0_14, %c0_15], %29 {strides = array<i32>} : memref<16x96xf32, #tpu.memory_space<vmem>>, vector<16x96xf32>,
    return
  }
  func.func @transform_0(%arg0: i32, %arg1: i32) -> (i32, i32) {
    %c0_i32 = arith.constant 0 : i32
    %c0_i32_0 = arith.constant 0 : i32
    return %arg0, %c0_i32 : i32, i32
  }
  func.func @transform_1(%arg0: i32, %arg1: i32) -> (i32, i32) {
    %c0_i32 = arith.constant 0 : i32
    %c0_i32_0 = arith.constant 0 : i32
    %c0_i32_1 = arith.constant 0 : i32
    return %c0_i32, %c0_i32_0 : i32, i32
  }
  func.func @transform_2(%arg0: i32, %arg1: i32) -> (i32, i32) {
    %c0_i32 = arith.constant 0 : i32
    %c0_i32_0 = arith.constant 0 : i32
    %c0_i32_1 = arith.constant 0 : i32
    return %c0_i32, %c0_i32_0 : i32, i32
  }
  func.func @transform_3(%arg0: i32, %arg1: i32) -> (i32, i32) {
    %c0_i32 = arith.constant 0 : i32
    %c0_i32_0 = arith.constant 0 : i32
    return %c0_i32, %arg1 : i32, i32
  }
  func.func @transform_4(%arg0: i32, %arg1: i32) -> (i32, i32) {
    %c0_i32 = arith.constant 0 : i32
    %c0_i32_0 = arith.constant 0 : i32
    return %c0_i32, %arg1 : i32, i32
  }
  func.func @transform_5(%arg0: i32, %arg1: i32) -> (i32, i32) {
    %c0_i32 = arith.constant 0 : i32
    return %arg0, %arg1 : i32, i32
  }
}

module attributes {stable_mosaic.version = 11 : i64} {
  func.func @_attention_kernel(%arg0: i32, %arg1: memref<8x96xf32, #tpu.memory_space<vmem>>, %arg2: memref<8x8xf32, #tpu.memory_space<vmem>>, %arg3: memref<8x32xf32, #tpu.memory_space<vmem>>) attributes {dimension_semantics = [#tpu.dimension_semantics<parallel>], iteration_bounds = array<i64: 2>, scalar_prefetch = 0 : i64, scratch_operands = 0 : i64, tpu.core_type = #tpu.core_type<tc>, window_params = [{transform_indices = @transform_0, window_bounds = array<i64: 8, 96>}, {pipeline_mode = #tpu.pipeline_mode<synchronous>, transform_indices = @transform_1, window_bounds = array<i64: 8, 8>}, {transform_indices = @transform_2, window_bounds = array<i64: 8, 32>}]} {
    %c0 = arith.constant 0 : index
    %c0_0 = arith.constant 0 : index
    %0 = vector.load %arg1[%c0, %c0_0] : memref<8x96xf32, #tpu.memory_space<vmem>>, vector<8x96xf32>
    %c0_1 = arith.constant 0 : index
    %c0_2 = arith.constant 0 : index
    %1 = vector.load %arg2[%c0_1, %c0_2] : memref<8x8xf32, #tpu.memory_space<vmem>>, vector<8x8xf32>
    %2 = vector.extract_strided_slice %0 {offsets = [0, 0], sizes = [8, 8], strides = [1, 1]} : vector<8x96xf32> to vector<8x8xf32>
    %3 = vector.extract_strided_slice %0 {offsets = [0, 32], sizes = [8, 8], strides = [1, 1]} : vector<8x96xf32> to vector<8x8xf32>
    %4 = vector.extract_strided_slice %0 {offsets = [0, 64], sizes = [8, 8], strides = [1, 1]} : vector<8x96xf32> to vector<8x8xf32>
    %cst = arith.constant dense<0.000000e+00> : vector<8x8xf32>
    %5 = tpu.matmul %2, %3, %cst {dimension_numbers = #tpu.dot_dimension_numbers<[1], [1], [0], [0], [0, 0, 1, 0], [], []>} : vector<8x8xf32>, vector<8x8xf32>, vector<8x8xf32> -> vector<8x8xf32>
    %cst_3 = arith.constant 0.353553385 : f32
    %6 = vector.broadcast %cst_3 : f32 to vector<8x8xf32>
    %7 = arith.mulf %5, %6 : vector<8x8xf32>
    %8 = arith.addf %7, %1 : vector<8x8xf32>
    %cst_4 = arith.constant dense<0xFF800000> : vector<8xf32>
    %9 = vector.multi_reduction <maximumf>, %8, %cst_4 [1] : vector<8x8xf32> to vector<8xf32>
    %10 = vector.shape_cast %9 : vector<8xf32> to vector<8x1xf32>
    %11 = vector.broadcast %10 : vector<8x1xf32> to vector<8x8xf32>
    %12 = arith.subf %8, %11 : vector<8x8xf32>
    %13 = math.exp %12 : vector<8x8xf32>
    %cst_5 = arith.constant dense<0.000000e+00> : vector<8xf32>
    %14 = vector.multi_reduction <add>, %13, %cst_5 [1] : vector<8x8xf32> to vector<8xf32>
    %15 = vector.shape_cast %14 : vector<8xf32> to vector<8x1xf32>
    %16 = tpu.reciprocal %15 {approx = true} : vector<8x1xf32> -> vector<8x1xf32>
    %cst_6 = arith.constant dense<0.000000e+00> : vector<8x8xf32>
    %17 = tpu.matmul %13, %4, %cst_6 {dimension_numbers = #tpu.dot_dimension_numbers<[1], [0], [0], [1], [0, 0, 1, 1], [], []>} : vector<8x8xf32>, vector<8x8xf32>, vector<8x8xf32> -> vector<8x8xf32>
    %18 = vector.broadcast %16 : vector<8x1xf32> to vector<8x8xf32>
    %19 = arith.mulf %17, %18 : vector<8x8xf32>
    %20 = vector.extract_strided_slice %0 {offsets = [0, 8], sizes = [8, 8], strides = [1, 1]} : vector<8x96xf32> to vector<8x8xf32>
    %21 = vector.extract_strided_slice %0 {offsets = [0, 40], sizes = [8, 8], strides = [1, 1]} : vector<8x96xf32> to vector<8x8xf32>
    %22 = vector.extract_strided_slice %0 {offsets = [0, 72], sizes = [8, 8], strides = [1, 1]} : vector<8x96xf32> to vector<8x8xf32>
    %cst_7 = arith.constant dense<0.000000e+00> : vector<8x8xf32>
    %23 = tpu.matmul %20, %21, %cst_7 {dimension_numbers = #tpu.dot_dimension_numbers<[1], [1], [0], [0], [0, 0, 1, 0], [], []>} : vector<8x8xf32>, vector<8x8xf32>, vector<8x8xf32> -> vector<8x8xf32>
    %cst_8 = arith.constant 0.353553385 : f32
    %24 = vector.broadcast %cst_8 : f32 to vector<8x8xf32>
    %25 = arith.mulf %23, %24 : vector<8x8xf32>
    %26 = arith.addf %25, %1 : vector<8x8xf32>
    %cst_9 = arith.constant dense<0xFF800000> : vector<8xf32>
    %27 = vector.multi_reduction <maximumf>, %26, %cst_9 [1] : vector<8x8xf32> to vector<8xf32>
    %28 = vector.shape_cast %27 : vector<8xf32> to vector<8x1xf32>
    %29 = vector.broadcast %28 : vector<8x1xf32> to vector<8x8xf32>
    %30 = arith.subf %26, %29 : vector<8x8xf32>
    %31 = math.exp %30 : vector<8x8xf32>
    %cst_10 = arith.constant dense<0.000000e+00> : vector<8xf32>
    %32 = vector.multi_reduction <add>, %31, %cst_10 [1] : vector<8x8xf32> to vector<8xf32>
    %33 = vector.shape_cast %32 : vector<8xf32> to vector<8x1xf32>
    %34 = tpu.reciprocal %33 {approx = true} : vector<8x1xf32> -> vector<8x1xf32>
    %cst_11 = arith.constant dense<0.000000e+00> : vector<8x8xf32>
    %35 = tpu.matmul %31, %22, %cst_11 {dimension_numbers = #tpu.dot_dimension_numbers<[1], [0], [0], [1], [0, 0, 1, 1], [], []>} : vector<8x8xf32>, vector<8x8xf32>, vector<8x8xf32> -> vector<8x8xf32>
    %36 = vector.broadcast %34 : vector<8x1xf32> to vector<8x8xf32>
    %37 = arith.mulf %35, %36 : vector<8x8xf32>
    %38 = vector.extract_strided_slice %0 {offsets = [0, 16], sizes = [8, 8], strides = [1, 1]} : vector<8x96xf32> to vector<8x8xf32>
    %39 = vector.extract_strided_slice %0 {offsets = [0, 48], sizes = [8, 8], strides = [1, 1]} : vector<8x96xf32> to vector<8x8xf32>
    %40 = vector.extract_strided_slice %0 {offsets = [0, 80], sizes = [8, 8], strides = [1, 1]} : vector<8x96xf32> to vector<8x8xf32>
    %cst_12 = arith.constant dense<0.000000e+00> : vector<8x8xf32>
    %41 = tpu.matmul %38, %39, %cst_12 {dimension_numbers = #tpu.dot_dimension_numbers<[1], [1], [0], [0], [0, 0, 1, 0], [], []>} : vector<8x8xf32>, vector<8x8xf32>, vector<8x8xf32> -> vector<8x8xf32>
    %cst_13 = arith.constant 0.353553385 : f32
    %42 = vector.broadcast %cst_13 : f32 to vector<8x8xf32>
    %43 = arith.mulf %41, %42 : vector<8x8xf32>
    %44 = arith.addf %43, %1 : vector<8x8xf32>
    %cst_14 = arith.constant dense<0xFF800000> : vector<8xf32>
    %45 = vector.multi_reduction <maximumf>, %44, %cst_14 [1] : vector<8x8xf32> to vector<8xf32>
    %46 = vector.shape_cast %45 : vector<8xf32> to vector<8x1xf32>
    %47 = vector.broadcast %46 : vector<8x1xf32> to vector<8x8xf32>
    %48 = arith.subf %44, %47 : vector<8x8xf32>
    %49 = math.exp %48 : vector<8x8xf32>
    %cst_15 = arith.constant dense<0.000000e+00> : vector<8xf32>
    %50 = vector.multi_reduction <add>, %49, %cst_15 [1] : vector<8x8xf32> to vector<8xf32>
    %51 = vector.shape_cast %50 : vector<8xf32> to vector<8x1xf32>
    %52 = tpu.reciprocal %51 {approx = true} : vector<8x1xf32> -> vector<8x1xf32>
    %cst_16 = arith.constant dense<0.000000e+00> : vector<8x8xf32>
    %53 = tpu.matmul %49, %40, %cst_16 {dimension_numbers = #tpu.dot_dimension_numbers<[1], [0], [0], [1], [0, 0, 1, 1], [], []>} : vector<8x8xf32>, vector<8x8xf32>, vector<8x8xf32> -> vector<8x8xf32>
    %54 = vector.broadcast %52 : vector<8x1xf32> to vector<8x8xf32>
    %55 = arith.mulf %53, %54 : vector<8x8xf32>
    %56 = vector.extract_strided_slice %0 {offsets = [0, 24], sizes = [8, 8], strides = [1, 1]} : vector<8x96xf32> to vector<8x8xf32>
    %57 = vector.extract_strided_slice %0 {offsets = [0, 56], sizes = [8, 8], strides = [1, 1]} : vector<8x96xf32> to vector<8x8xf32>
    %58 = vector.extract_strided_slice %0 {offsets = [0, 88], sizes = [8, 8], strides = [1, 1]} : vector<8x96xf32> to vector<8x8xf32>
    %cst_17 = arith.constant dense<0.000000e+00> : vector<8x8xf32>
    %59 = tpu.matmul %56, %57, %cst_17 {dimension_numbers = #tpu.dot_dimension_numbers<[1], [1], [0], [0], [0, 0, 1, 0], [], []>} : vector<8x8xf32>, vector<8x8xf32>, vector<8x8xf32> -> vector<8x8xf32>
    %cst_18 = arith.constant 0.353553385 : f32
    %60 = vector.broadcast %cst_18 : f32 to vector<8x8xf32>
    %61 = arith.mulf %59, %60 : vector<8x8xf32>
    %62 = arith.addf %61, %1 : vector<8x8xf32>
    %cst_19 = arith.constant dense<0xFF800000> : vector<8xf32>
    %63 = vector.multi_reduction <maximumf>, %62, %cst_19 [1] : vector<8x8xf32> to vector<8xf32>
    %64 = vector.shape_cast %63 : vector<8xf32> to vector<8x1xf32>
    %65 = vector.broadcast %64 : vector<8x1xf32> to vector<8x8xf32>
    %66 = arith.subf %62, %65 : vector<8x8xf32>
    %67 = math.exp %66 : vector<8x8xf32>
    %cst_20 = arith.constant dense<0.000000e+00> : vector<8xf32>
    %68 = vector.multi_reduction <add>, %67, %cst_20 [1] : vector<8x8xf32> to vector<8xf32>
    %69 = vector.shape_cast %68 : vector<8xf32> to vector<8x1xf32>
    %70 = tpu.reciprocal %69 {approx = true} : vector<8x1xf32> -> vector<8x1xf32>
    %cst_21 = arith.constant dense<0.000000e+00> : vector<8x8xf32>
    %71 = tpu.matmul %67, %58, %cst_21 {dimension_numbers = #tpu.dot_dimension_numbers<[1], [0], [0], [1], [0, 0, 1, 1], [], []>} : vector<8x8xf32>, vector<8x8xf32>, vector<8x8xf32> -> vector<8x8xf32>
    %72 = vector.broadcast %70 : vector<8x1xf32> to vector<8x8xf32>
    %73 = arith.mulf %71, %72 : vector<8x8xf32>
    %74 = tpu.concatenate %19, %37, %55, %73 in 1 : vector<8x8xf32>, vector<8x8xf32>, vector<8x8xf32>, vector<8x8xf32> -> vector<8x32xf32>
    %c0_22 = arith.constant 0 : index
    %c0_23 = arith.constant 0 : index
    %75 = vector.load %arg3[%c0_22, %c0_23] : memref<8x32xf32, #tpu.memory_space<vmem>>, vector<8x32xf32>
    tpu.vector_store %arg3[%c0_22, %c0_23], %74 {strides = array<i32>} : memref<8x32xf32, #tpu.memory_space<vmem>>, vector<8x32xf32>,
    return
  }
  func.func @transform_0(%arg0: i32) -> (i32, i32) {
    %c0_i32 = arith.constant 0 : i32
    %c0_i32_0 = arith.constant 0 : i32
    return %arg0, %c0_i32 : i32, i32
  }
  func.func @transform_1(%arg0: i32) -> (i32, i32) {
    %c0_i32 = arith.constant 0 : i32
    %c0_i32_0 = arith.constant 0 : i32
    %c0_i32_1 = arith.constant 0 : i32
    return %c0_i32, %c0_i32_0 : i32, i32
  }
  func.func @transform_2(%arg0: i32) -> (i32, i32) {
    %c0_i32 = arith.constant 0 : i32
    %c0_i32_0 = arith.constant 0 : i32
    return %arg0, %c0_i32 : i32, i32
  }
}

module attributes {stable_mosaic.version = 11 : i64} {
  func.func @_ln_linear_kernel(%arg0: i32, %arg1: i32, %arg2: memref<16x32xf32, #tpu.memory_space<vmem>>, %arg3: memref<1x32xf32, #tpu.memory_space<vmem>>, %arg4: memref<1x32xf32, #tpu.memory_space<vmem>>, %arg5: memref<32x64xf32, #tpu.memory_space<vmem>>, %arg6: memref<1x64xf32, #tpu.memory_space<vmem>>, %arg7: memref<16x64xf32, #tpu.memory_space<vmem>>) attributes {dimension_semantics = [#tpu.dimension_semantics<parallel>, #tpu.dimension_semantics<parallel>], iteration_bounds = array<i64: 1, 1>, scalar_prefetch = 0 : i64, scratch_operands = 0 : i64, tpu.core_type = #tpu.core_type<tc>, window_params = [{transform_indices = @transform_0, window_bounds = array<i64: 16, 32>}, {pipeline_mode = #tpu.pipeline_mode<synchronous>, transform_indices = @transform_1, window_bounds = array<i64: 1, 32>}, {pipeline_mode = #tpu.pipeline_mode<synchronous>, transform_indices = @transform_2, window_bounds = array<i64: 1, 32>}, {transform_indices = @transform_3, window_bounds = array<i64: 32, 64>}, {transform_indices = @transform_4, window_bounds = array<i64: 1, 64>}, {transform_indices = @transform_5, window_bounds = array<i64: 16, 64>}]} {
    %c0 = arith.constant 0 : index
    %c0_0 = arith.constant 0 : index
    %0 = vector.load %arg2[%c0, %c0_0] : memref<16x32xf32, #tpu.memory_space<vmem>>, vector<16x32xf32>
    %cst = arith.constant dense<0.000000e+00> : vector<16xf32>
    %1 = vector.multi_reduction <add>, %0, %cst [1] : vector<16x32xf32> to vector<16xf32>
    %2 = vector.shape_cast %1 : vector<16xf32> to vector<16x1xf32>
    %cst_1 = arith.constant 3.200000e+01 : f32
    %3 = vector.broadcast %cst_1 : f32 to vector<16x1xf32>
    %4 = arith.divf %2, %3 : vector<16x1xf32>
    %5 = vector.broadcast %4 : vector<16x1xf32> to vector<16x32xf32>
    %6 = arith.subf %0, %5 : vector<16x32xf32>
    %7 = arith.mulf %6, %6 : vector<16x32xf32>
    %cst_2 = arith.constant dense<0.000000e+00> : vector<16xf32>
    %8 = vector.multi_reduction <add>, %7, %cst_2 [1] : vector<16x32xf32> to vector<16xf32>
    %9 = vector.shape_cast %8 : vector<16xf32> to vector<16x1xf32>
    %cst_3 = arith.constant 3.200000e+01 : f32
    %10 = vector.broadcast %cst_3 : f32 to vector<16x1xf32>
    %11 = arith.divf %9, %10 : vector<16x1xf32>
    %12 = vector.broadcast %4 : vector<16x1xf32> to vector<16x32xf32>
    %13 = arith.subf %0, %12 : vector<16x32xf32>
    %cst_4 = arith.constant 9.99999974E-6 : f32
    %14 = vector.broadcast %cst_4 : f32 to vector<16x1xf32>
    %15 = arith.addf %11, %14 : vector<16x1xf32>
    %16 = math.rsqrt %15 : vector<16x1xf32>
    %17 = vector.broadcast %16 : vector<16x1xf32> to vector<16x32xf32>
    %18 = arith.mulf %13, %17 : vector<16x32xf32>
    %c0_5 = arith.constant 0 : index
    %c0_6 = arith.constant 0 : index
    %19 = vector.load %arg3[%c0_5, %c0_6] : memref<1x32xf32, #tpu.memory_space<vmem>>, vector<1x32xf32>
    %20 = vector.broadcast %19 : vector<1x32xf32> to vector<16x32xf32>
    %21 = arith.mulf %18, %20 : vector<16x32xf32>
    %c0_7 = arith.constant 0 : index
    %c0_8 = arith.constant 0 : index
    %22 = vector.load %arg4[%c0_7, %c0_8] : memref<1x32xf32, #tpu.memory_space<vmem>>, vector<1x32xf32>
    %23 = vector.broadcast %22 : vector<1x32xf32> to vector<16x32xf32>
    %24 = arith.addf %21, %23 : vector<16x32xf32>
    %c0_9 = arith.constant 0 : index
    %c0_10 = arith.constant 0 : index
    %25 = vector.load %arg5[%c0_9, %c0_10] : memref<32x64xf32, #tpu.memory_space<vmem>>, vector<32x64xf32>
    %cst_11 = arith.constant dense<0.000000e+00> : vector<16x64xf32>
    %26 = tpu.matmul %24, %25, %cst_11 {dimension_numbers = #tpu.dot_dimension_numbers<[1], [0], [0], [1], [0, 0, 1, 1], [], []>} : vector<16x32xf32>, vector<32x64xf32>, vector<16x64xf32> -> vector<16x64xf32>
    %c0_12 = arith.constant 0 : index
    %c0_13 = arith.constant 0 : index
    %27 = vector.load %arg6[%c0_12, %c0_13] : memref<1x64xf32, #tpu.memory_space<vmem>>, vector<1x64xf32>
    %28 = vector.broadcast %27 : vector<1x64xf32> to vector<16x64xf32>
    %29 = arith.addf %26, %28 : vector<16x64xf32>
    %cst_14 = arith.constant 0.000000e+00 : f32
    %30 = vector.broadcast %cst_14 : f32 to vector<16x64xf32>
    %31 = arith.maximumf %29, %30 : vector<16x64xf32>
    %c0_15 = arith.constant 0 : index
    %c0_16 = arith.constant 0 : index
    %32 = vector.load %arg7[%c0_15, %c0_16] : memref<16x64xf32, #tpu.memory_space<vmem>>, vector<16x64xf32>
    tpu.vector_store %arg7[%c0_15, %c0_16], %31 {strides = array<i32>} : memref<16x64xf32, #tpu.memory_space<vmem>>, vector<16x64xf32>,
    return
  }
  func.func @transform_0(%arg0: i32, %arg1: i32) -> (i32, i32) {
    %c0_i32 = arith.constant 0 : i32
    %c0_i32_0 = arith.constant 0 : i32
    return %arg0, %c0_i32 : i32, i32
  }
  func.func @transform_1(%arg0: i32, %arg1: i32) -> (i32, i32) {
    %c0_i32 = arith.constant 0 : i32
    %c0_i32_0 = arith.constant 0 : i32
    %c0_i32_1 = arith.constant 0 : i32
    return %c0_i32, %c0_i32_0 : i32, i32
  }
  func.func @transform_2(%arg0: i32, %arg1: i32) -> (i32, i32) {
    %c0_i32 = arith.constant 0 : i32
    %c0_i32_0 = arith.constant 0 : i32
    %c0_i32_1 = arith.constant 0 : i32
    return %c0_i32, %c0_i32_0 : i32, i32
  }
  func.func @transform_3(%arg0: i32, %arg1: i32) -> (i32, i32) {
    %c0_i32 = arith.constant 0 : i32
    %c0_i32_0 = arith.constant 0 : i32
    return %c0_i32, %arg1 : i32, i32
  }
  func.func @transform_4(%arg0: i32, %arg1: i32) -> (i32, i32) {
    %c0_i32 = arith.constant 0 : i32
    %c0_i32_0 = arith.constant 0 : i32
    return %c0_i32, %arg1 : i32, i32
  }
  func.func @transform_5(%arg0: i32, %arg1: i32) -> (i32, i32) {
    %c0_i32 = arith.constant 0 : i32
    return %arg0, %arg1 : i32, i32
  }
}

module attributes {stable_mosaic.version = 11 : i64} {
  func.func @_linear_residual_kernel(%arg0: i32, %arg1: i32, %arg2: i32, %arg3: memref<16x32xf32, #tpu.memory_space<vmem>>, %arg4: memref<32x32xf32, #tpu.memory_space<vmem>>, %arg5: memref<1x32xf32, #tpu.memory_space<vmem>>, %arg6: memref<16x32xf32, #tpu.memory_space<vmem>>, %arg7: memref<16x32xf32, #tpu.memory_space<vmem>>, %arg8: memref<16x32xf32, #tpu.memory_space<vmem>>) attributes {dimension_semantics = [#tpu.dimension_semantics<parallel>, #tpu.dimension_semantics<parallel>, #tpu.dimension_semantics<arbitrary>], iteration_bounds = array<i64: 1, 1, 1>, scalar_prefetch = 0 : i64, scratch_operands = 1 : i64, tpu.core_type = #tpu.core_type<tc>, window_params = [{transform_indices = @transform_0, window_bounds = array<i64: 16, 32>}, {transform_indices = @transform_1, window_bounds = array<i64: 32, 32>}, {transform_indices = @transform_2, window_bounds = array<i64: 1, 32>}, {transform_indices = @transform_3, window_bounds = array<i64: 16, 32>}, {transform_indices = @transform_4, window_bounds = array<i64: 16, 32>}]} {
    %c0_i32 = arith.constant 0 : i32
    %0 = arith.cmpi eq, %arg2, %c0_i32 : i32
    %1 = arith.extui %0 : i1 to i32
    %c0_i32_0 = arith.constant 0 : i32
    %2 = arith.cmpi ne, %1, %c0_i32_0 : i32
    scf.if %2 {
      %cst_10 = arith.constant 0.000000e+00 : f32
      %12 = vector.broadcast %cst_10 : f32 to vector<16x32xf32>
      %c0_11 = arith.constant 0 : index
      %c0_12 = arith.constant 0 : index
      %13 = vector.load %arg8[%c0_11, %c0_12] : memref<16x32xf32, #tpu.memory_space<vmem>>, vector<16x32xf32>
      tpu.vector_store %arg8[%c0_11, %c0_12], %12 {strides = array<i32>} : memref<16x32xf32, #tpu.memory_space<vmem>>, vector<16x32xf32>,
    } else {
    }
    %c0 = arith.constant 0 : index
    %c0_1 = arith.constant 0 : index
    %3 = vector.load %arg8[%c0, %c0_1] : memref<16x32xf32, #tpu.memory_space<vmem>>, vector<16x32xf32>
    %c0_2 = arith.constant 0 : index
    %c0_3 = arith.constant 0 : index
    %4 = vector.load %arg3[%c0_2, %c0_3] : memref<16x32xf32, #tpu.memory_space<vmem>>, vector<16x32xf32>
    %c0_4 = arith.constant 0 : index
    %c0_5 = arith.constant 0 : index
    %5 = vector.load %arg4[%c0_4, %c0_5] : memref<32x32xf32, #tpu.memory_space<vmem>>, vector<32x32xf32>
    %cst = arith.constant dense<0.000000e+00> : vector<16x32xf32>
    %6 = tpu.matmul %4, %5, %cst {dimension_numbers = #tpu.dot_dimension_numbers<[1], [0], [0], [1], [0, 0, 1, 1], [], []>} : vector<16x32xf32>, vector<32x32xf32>, vector<16x32xf32> -> vector<16x32xf32>
    %7 = arith.addf %3, %6 : vector<16x32xf32>
    %c0_6 = arith.constant 0 : index
    %c0_7 = arith.constant 0 : index
    %8 = vector.load %arg8[%c0_6, %c0_7] : memref<16x32xf32, #tpu.memory_space<vmem>>, vector<16x32xf32>
    tpu.vector_store %arg8[%c0_6, %c0_7], %7 {strides = array<i32>} : memref<16x32xf32, #tpu.memory_space<vmem>>, vector<16x32xf32>,
    %c0_i32_8 = arith.constant 0 : i32
    %9 = arith.cmpi eq, %arg2, %c0_i32_8 : i32
    %10 = arith.extui %9 : i1 to i32
    %c0_i32_9 = arith.constant 0 : i32
    %11 = arith.cmpi ne, %10, %c0_i32_9 : i32
    scf.if %11 {
      %c0_10 = arith.constant 0 : index
      %c0_11 = arith.constant 0 : index
      %12 = vector.load %arg8[%c0_10, %c0_11] : memref<16x32xf32, #tpu.memory_space<vmem>>, vector<16x32xf32>
      %c0_12 = arith.constant 0 : index
      %c0_13 = arith.constant 0 : index
      %13 = vector.load %arg5[%c0_12, %c0_13] : memref<1x32xf32, #tpu.memory_space<vmem>>, vector<1x32xf32>
      %14 = vector.broadcast %13 : vector<1x32xf32> to vector<16x32xf32>
      %15 = arith.addf %12, %14 : vector<16x32xf32>
      %c0_14 = arith.constant 0 : index
      %c0_15 = arith.constant 0 : index
      %16 = vector.load %arg6[%c0_14, %c0_15] : memref<16x32xf32, #tpu.memory_space<vmem>>, vector<16x32xf32>
      %17 = arith.addf %15, %16 : vector<16x32xf32>
      %c0_16 = arith.constant 0 : index
      %c0_17 = arith.constant 0 : index
      %18 = vector.load %arg7[%c0_16, %c0_17] : memref<16x32xf32, #tpu.memory_space<vmem>>, vector<16x32xf32>
      tpu.vector_store %arg7[%c0_16, %c0_17], %17 {strides = array<i32>} : memref<16x32xf32, #tpu.memory_space<vmem>>, vector<16x32xf32>,
    } else {
    }
    return
  }
  func.func @transform_0(%arg0: i32, %arg1: i32, %arg2: i32) -> (i32, i32) {
    %c0_i32 = arith.constant 0 : i32
    return %arg0, %arg2 : i32, i32
  }
  func.func @transform_1(%arg0: i32, %arg1: i32, %arg2: i32) -> (i32, i32) {
    %c0_i32 = arith.constant 0 : i32
    return %arg2, %arg1 : i32, i32
  }
  func.func @transform_2(%arg0: i32, %arg1: i32, %arg2: i32) -> (i32, i32) {
    %c0_i32 = arith.constant 0 : i32
    %c0_i32_0 = arith.constant 0 : i32
    return %c0_i32, %arg1 : i32, i32
  }
  func.func @transform_3(%arg0: i32, %arg1: i32, %arg2: i32) -> (i32, i32) {
    %c0_i32 = arith.constant 0 : i32
    return %arg0, %arg1 : i32, i32
  }
  func.func @transform_4(%arg0: i32, %arg1: i32, %arg2: i32) -> (i32, i32) {
    %c0_i32 = arith.constant 0 : i32
    return %arg0, %arg1 : i32, i32
  }
}

module attributes {stable_mosaic.version = 11 : i64} {
  func.func @_linear_residual_kernel(%arg0: i32, %arg1: i32, %arg2: i32, %arg3: memref<16x64xf32, #tpu.memory_space<vmem>>, %arg4: memref<64x32xf32, #tpu.memory_space<vmem>>, %arg5: memref<1x32xf32, #tpu.memory_space<vmem>>, %arg6: memref<16x32xf32, #tpu.memory_space<vmem>>, %arg7: memref<16x32xf32, #tpu.memory_space<vmem>>, %arg8: memref<16x32xf32, #tpu.memory_space<vmem>>) attributes {dimension_semantics = [#tpu.dimension_semantics<parallel>, #tpu.dimension_semantics<parallel>, #tpu.dimension_semantics<arbitrary>], iteration_bounds = array<i64: 1, 1, 1>, scalar_prefetch = 0 : i64, scratch_operands = 1 : i64, tpu.core_type = #tpu.core_type<tc>, window_params = [{transform_indices = @transform_0, window_bounds = array<i64: 16, 64>}, {transform_indices = @transform_1, window_bounds = array<i64: 64, 32>}, {transform_indices = @transform_2, window_bounds = array<i64: 1, 32>}, {transform_indices = @transform_3, window_bounds = array<i64: 16, 32>}, {transform_indices = @transform_4, window_bounds = array<i64: 16, 32>}]} {
    %c0_i32 = arith.constant 0 : i32
    %0 = arith.cmpi eq, %arg2, %c0_i32 : i32
    %1 = arith.extui %0 : i1 to i32
    %c0_i32_0 = arith.constant 0 : i32
    %2 = arith.cmpi ne, %1, %c0_i32_0 : i32
    scf.if %2 {
      %cst_10 = arith.constant 0.000000e+00 : f32
      %12 = vector.broadcast %cst_10 : f32 to vector<16x32xf32>
      %c0_11 = arith.constant 0 : index
      %c0_12 = arith.constant 0 : index
      %13 = vector.load %arg8[%c0_11, %c0_12] : memref<16x32xf32, #tpu.memory_space<vmem>>, vector<16x32xf32>
      tpu.vector_store %arg8[%c0_11, %c0_12], %12 {strides = array<i32>} : memref<16x32xf32, #tpu.memory_space<vmem>>, vector<16x32xf32>,
    } else {
    }
    %c0 = arith.constant 0 : index
    %c0_1 = arith.constant 0 : index
    %3 = vector.load %arg8[%c0, %c0_1] : memref<16x32xf32, #tpu.memory_space<vmem>>, vector<16x32xf32>
    %c0_2 = arith.constant 0 : index
    %c0_3 = arith.constant 0 : index
    %4 = vector.load %arg3[%c0_2, %c0_3] : memref<16x64xf32, #tpu.memory_space<vmem>>, vector<16x64xf32>
    %c0_4 = arith.constant 0 : index
    %c0_5 = arith.constant 0 : index
    %5 = vector.load %arg4[%c0_4, %c0_5] : memref<64x32xf32, #tpu.memory_space<vmem>>, vector<64x32xf32>
    %cst = arith.constant dense<0.000000e+00> : vector<16x32xf32>
    %6 = tpu.matmul %4, %5, %cst {dimension_numbers = #tpu.dot_dimension_numbers<[1], [0], [0], [1], [0, 0, 1, 1], [], []>} : vector<16x64xf32>, vector<64x32xf32>, vector<16x32xf32> -> vector<16x32xf32>
    %7 = arith.addf %3, %6 : vector<16x32xf32>
    %c0_6 = arith.constant 0 : index
    %c0_7 = arith.constant 0 : index
    %8 = vector.load %arg8[%c0_6, %c0_7] : memref<16x32xf32, #tpu.memory_space<vmem>>, vector<16x32xf32>
    tpu.vector_store %arg8[%c0_6, %c0_7], %7 {strides = array<i32>} : memref<16x32xf32, #tpu.memory_space<vmem>>, vector<16x32xf32>,
    %c0_i32_8 = arith.constant 0 : i32
    %9 = arith.cmpi eq, %arg2, %c0_i32_8 : i32
    %10 = arith.extui %9 : i1 to i32
    %c0_i32_9 = arith.constant 0 : i32
    %11 = arith.cmpi ne, %10, %c0_i32_9 : i32
    scf.if %11 {
      %c0_10 = arith.constant 0 : index
      %c0_11 = arith.constant 0 : index
      %12 = vector.load %arg8[%c0_10, %c0_11] : memref<16x32xf32, #tpu.memory_space<vmem>>, vector<16x32xf32>
      %c0_12 = arith.constant 0 : index
      %c0_13 = arith.constant 0 : index
      %13 = vector.load %arg5[%c0_12, %c0_13] : memref<1x32xf32, #tpu.memory_space<vmem>>, vector<1x32xf32>
      %14 = vector.broadcast %13 : vector<1x32xf32> to vector<16x32xf32>
      %15 = arith.addf %12, %14 : vector<16x32xf32>
      %c0_14 = arith.constant 0 : index
      %c0_15 = arith.constant 0 : index
      %16 = vector.load %arg6[%c0_14, %c0_15] : memref<16x32xf32, #tpu.memory_space<vmem>>, vector<16x32xf32>
      %17 = arith.addf %15, %16 : vector<16x32xf32>
      %c0_16 = arith.constant 0 : index
      %c0_17 = arith.constant 0 : index
      %18 = vector.load %arg7[%c0_16, %c0_17] : memref<16x32xf32, #tpu.memory_space<vmem>>, vector<16x32xf32>
      tpu.vector_store %arg7[%c0_16, %c0_17], %17 {strides = array<i32>} : memref<16x32xf32, #tpu.memory_space<vmem>>, vector<16x32xf32>,
    } else {
    }
    return
  }
  func.func @transform_0(%arg0: i32, %arg1: i32, %arg2: i32) -> (i32, i32) {
    %c0_i32 = arith.constant 0 : i32
    return %arg0, %arg2 : i32, i32
  }
  func.func @transform_1(%arg0: i32, %arg1: i32, %arg2: i32) -> (i32, i32) {
    %c0_i32 = arith.constant 0 : i32
    return %arg2, %arg1 : i32, i32
  }
  func.func @transform_2(%arg0: i32, %arg1: i32, %arg2: i32) -> (i32, i32) {
    %c0_i32 = arith.constant 0 : i32
    %c0_i32_0 = arith.constant 0 : i32
    return %c0_i32, %arg1 : i32, i32
  }
  func.func @transform_3(%arg0: i32, %arg1: i32, %arg2: i32) -> (i32, i32) {
    %c0_i32 = arith.constant 0 : i32
    return %arg0, %arg1 : i32, i32
  }
  func.func @transform_4(%arg0: i32, %arg1: i32, %arg2: i32) -> (i32, i32) {
    %c0_i32 = arith.constant 0 : i32
    return %arg0, %arg1 : i32, i32
  }
}

</mosaic_0001>

<llo_original>
// kernel: decoder_layer.8
$region0: #{decoder_layer.8}
  #allocation0 [shape = 'u32[]', space=smem, size = 0x4, offset = 0x4, fixed_abs, tag = 'smem constant byte address 0x4 - core index']
  #allocation1 [shape = 'u32[144,128]{1,0:T(1,128)}', space=vmem, size = 0x12000, scoped, tag = 'internal scratch']
  %s0 = inlined_call_operand.vmem [shape: f32[16,32], index: 0, kind: input, shape index: {}]
  %s1 = inlined_call_operand.vmem [shape: f32[1,32], index: 1, kind: input, shape index: {}]
  %s2 = inlined_call_operand.vmem [shape: f32[1,32], index: 2, kind: input, shape index: {}]
  %s3 = inlined_call_operand.vmem [shape: f32[32,96], index: 3, kind: input, shape index: {}]
  %s4 = inlined_call_operand.vmem [shape: f32[1,96], index: 4, kind: input, shape index: {}]
  %s5 = inlined_call_operand.vmem [shape: f32[16,96], index: 5, kind: output, shape index: {}]
  %s6 = sld [smem:[#allocation0]]
  $region30: #{decoder_layer.8} parent=0
    _
  %s8 = ssub.s32 1, %s6
  %s9 = scalar_select 0, %s8, %s6
  // Predicated region
  $region2: #{decoder_layer.8} parent=0 // pred_check
    _
  $region3: #{decoder_layer.8} parent=0 // pred_check_branch
    %11 = sbr.rel (0) target = $region5
  $region4: #{decoder_layer.8} parent=0 // pred_region
    _
  $region5: #{decoder_layer.8} parent=0 // pred_fallthru
    _
  // Predicated region
  $region6: #{decoder_layer.8} parent=0 // pred_check
    _
  $region7: #{decoder_layer.8} parent=0 // pred_check_branch
    %13 = sbr.rel (0) target = $region9
  $region8: #{decoder_layer.8} parent=0 // pred_region
    _
  $region9: #{decoder_layer.8} parent=0 // pred_fallthru
    _
  // Predicated region
  $region10: #{decoder_layer.8} parent=0 // pred_check
    _
  $region11: #{decoder_layer.8} parent=0 // pred_check_branch
    %15 = sbr.rel (0) target = $region13
  $region12: #{decoder_layer.8} parent=0 // pred_region
    _
  $region13: #{decoder_layer.8} parent=0 // pred_fallthru
    _
  // Predicated region
  $region14: #{decoder_layer.8} parent=0 // pred_check
    _
  $region15: #{decoder_layer.8} parent=0 // pred_check_branch
    %17 = sbr.rel (0) target = $region17
  $region16: #{decoder_layer.8} parent=0 // pred_region
    _
  $region17: #{decoder_layer.8} parent=0 // pred_fallthru
    _
  // Predicated region
  $region18: #{decoder_layer.8} parent=0 // pred_check
    _
  $region19: #{decoder_layer.8} parent=0 // pred_check_branch
    %19 = sbr.rel (0) target = $region21
  $region20: #{decoder_layer.8} parent=0 // pred_region
    _
  $region21: #{decoder_layer.8} parent=0 // pred_fallthru
    _
  %v20 = vld [vmem:[%s0] sm:$0xff]
  %v21 = vld [vmem:[%s0 + $0x8] sm:$0xff]
  %vm22 = vcmask 261120
  %v23 = vsel %vm22, %v20, 0.0
  %24 = vadd.xlane.f32.xlu0 %v23
  %v25 = vpop.xlane.xlu0 %24
  %v26 = vsel %vm22, %v21, 0.0
  %27 = vadd.xlane.f32.xlu0 %v26
  %v28 = vpop.xlane.xlu0 %27
  %v29 = vrcp.pop 32.0
  %v30 = vmul.f32 %v25, %v29
  %v31 = vmul.f32 %v28, %v29
  %v32 = vsub.f32 %v20, %v30
  %v33 = vsub.f32 %v21, %v31
  %v34 = vmul.f32 %v32, %v32
  %v35 = vmul.f32 %v33, %v33
  %v36 = vsel %vm22, %v34, 0.0
  %37 = vadd.xlane.f32.xlu0 %v36
  %v38 = vpop.xlane.xlu0 %37
  %v39 = vsel %vm22, %v35, 0.0
  %40 = vadd.xlane.f32.xlu0 %v39
  %v41 = vpop.xlane.xlu0 %40
  %v42 = vmul.f32 %v38, %v29
  %v43 = vmul.f32 %v41, %v29
  %v44 = vadd.f32 %v42, 1e-05
  %v45 = vadd.f32 %v43, 1e-05
  %v46 = vrsqrt.pop %v44
  %v47 = vrsqrt.pop %v45
  %v48 = vmul.f32 %v32, %v46
  %v49 = vmul.f32 %v33, %v47
  %v50 = vld [vmem:[%s1] sm:$0x1]
  %v52 = vlaneseq
  %v53 = vshrl.u32 %v52, 7
  %v54 = vsub.s32 0, %v53
  %v55 = vrot.slane %v50, %v54
  %v57 = vmul.f32 %v48, %v55
  %v58 = vmul.f32 %v49, %v55
  %v59 = vld [vmem:[%s2] sm:$0x1]
  %v61 = vlaneseq
  %v62 = vshrl.u32 %v61, 7
  %v63 = vsub.s32 0, %v62
  %v64 = vrot.slane %v59, %v63
  %v66 = vadd.f32 %v57, %v64
  %v67 = vadd.f32 %v58, %v64
  %v68 = vld [vmem:[%s3] sm:$0xff]
  %v69 = vld [vmem:[%s3 + $0x8] sm:$0xff]
  %v70 = vld [vmem:[%s3 + $0x10] sm:$0xff]
  %v71 = vld [vmem:[%s3 + $0x18] sm:$0xff]
  %v72 = vld [vmem:[%s4] sm:$0x1]
  %v74 = vlaneseq
  %v75 = vshrl.u32 %v74, 7
  %v76 = vsub.s32 0, %v75
  %v77 = vrot.slane %v72, %v76
  %v80 = vsel %vm22, %v66, 0
  %v83 = vsel %vm22, %v67, 0
  %85 = vmatprep.subr.mxu0 0.0
  %86 = vmatpush1.msra.mxu0 %v68
  %87 = vmatprep.subr.mxu0 0.0
  %88 = vmatpush1.msra.mxu0 %v69
  %89 = vmatprep.subr.mxu0 0.0
  %90 = vmatpush1.msra.mxu0 %v70
  %91 = vmatprep.subr.mxu0 0.0
  %92 = vmatpush1.msra.mxu0 %v71
  %93 = vmatprep.subr.mxu0 0.0
  %94 = vmatpush1.msra.mxu0 0.0
  %95 = vmatprep.subr.mxu0 0.0
  %96 = vmatpush1.msra.mxu0 0.0
  %97 = vmatprep.subr.mxu0 0.0
  %98 = vmatpush1.msra.mxu0 0.0
  %99 = vmatprep.subr.mxu0 0.0
  %100 = vmatpush1.msra.mxu0 0.0
  %101 = vmatprep.subr.mxu0 0.0
  %102 = vmatpush1.msra.mxu0 0.0
  %103 = vmatprep.subr.mxu0 0.0
  %104 = vmatpush1.msra.mxu0 0.0
  %105 = vmatprep.subr.mxu0 0.0
  %106 = vmatpush1.msra.mxu0 0.0
  %107 = vmatprep.subr.mxu0 0.0
  %108 = vmatpush1.msra.mxu0 0.0
  %109 = vmatprep.subr.mxu0 0.0
  %110 = vmatpush1.msra.mxu0 0.0
  %111 = vmatprep.subr.mxu0 0.0
  %112 = vmatpush1.msra.mxu0 0.0
  %113 = vmatprep.subr.mxu0 0.0
  %114 = vmatpush1.msra.mxu0 0.0
  %115 = vmatprep.subr.mxu0 0.0
  %116 = vmatpush1.msra.mxu0 0.0
  %117 = vmatprep.subr.mxu0 0.0
  %118 = vmatpush1.msra.mxu0 0.0
  %119 = vmatprep.subr.mxu0 0.0
  %120 = vmatpush1.msra.mxu0 0.0
  %121 = vmatprep.subr.mxu0 0.0
  %122 = vmatpush1.msra.mxu0 0.0
  %123 = vmatprep.subr.mxu0 0.0
  %124 = vmatpush1.msra.mxu0 0.0
  %125 = vmatprep.subr.mxu0 0.0
  %126 = vmatpush1.msra.mxu0 0.0
  %127 = vmatprep.subr.mxu0 0.0
  %128 = vmatpush1.msra.mxu0 0.0
  %129 = vmatprep.subr.mxu0 0.0
  %130 = vmatpush1.msra.mxu0 0.0
  %131 = vmatprep.subr.mxu0 0.0
  %132 = vmatpush1.msra.mxu0 0.0
  %133 = vmatprep.subr.mxu0 0.0
  %134 = vmatpush1.msra.mxu0 0.0
  %135 = vmatprep.subr.mxu0 0.0
  %136 = vmatpush1.msra.mxu0 0.0
  %137 = vmatprep.subr.mxu0 0.0
  %138 = vmatpush1.msra.mxu0 0.0
  %139 = vmatprep.subr.mxu0 0.0
  %140 = vmatpush1.msra.mxu0 0.0
  %141 = vmatprep.subr.mxu0 0.0
  %142 = vmatpush1.msra.mxu0 0.0
  %143 = vmatprep.subr.mxu0 0.0
  %144 = vmatpush1.msra.mxu0 0.0
  %145 = vmatprep.subr.mxu0 0.0
  %146 = vmatpush1.msra.mxu0 0.0
  %147 = vmatprep.subr.mxu0 0.0
  %148 = vmatpush1.msra.mxu0 0.0
  %149 = vmatprep.mubr.f32.mxu0 0.0
  %150 = vmatmul.mubr.f32.gmra.mrb[0].mxu0 %v80
  %v151 = vpop.f32.mrb[0].mxu0
  %v152 = vadd.f32 %v77, %v151
  %v153 = vpop.f32.mrb[0].mxu0
  %154 = vmatprep.mubr.f32.mxu0 0.0
  %155 = vmatmul.mubr.f32.gmra.mrb[0].mxu0 %v83
  %v156 = vpop.f32.mrb[0].mxu0
  %v157 = vadd.f32 %v77, %v156
  %v158 = vpop.f32.mrb[0].mxu0
  %159 = vdwg.mxu0
  %vm160 = vcmask 785408
  %161 = vst.msk [vmem:[%s5] sm:$0xff] %vm160, %v152
  %162 = vst.msk [vmem:[%s5 + $0x8] sm:$0xff] %vm160, %v157
  // Predicated region
  $region22: #{decoder_layer.8} parent=0 // pred_check
    _
  $region23: #{decoder_layer.8} parent=0 // pred_check_branch
    %164 = sbr.rel (0) target = $region25
  $region24: #{decoder_layer.8} parent=0 // pred_region
    _
  $region25: #{decoder_layer.8} parent=0 // pred_fallthru
    _
  // Predicated region
  $region26: #{decoder_layer.8} parent=0 // pred_check
    _
  $region27: #{decoder_layer.8} parent=0 // pred_check_branch
    %166 = sbr.rel (0) target = $region29
  $region28: #{decoder_layer.8} parent=0 // pred_region
    _
  $region29: #{decoder_layer.8} parent=0 // pred_fallthru
    _

// kernel: decoder_layer.14
$region0: #{decoder_layer.14}
  #allocation0 [shape = 'u32[]', space=smem, size = 0x4, offset = 0x4, fixed_abs, tag = 'smem constant byte address 0x4 - core index']
  #allocation1 [shape = 'u32[144,128]{1,0:T(1,128)}', space=vmem, size = 0x12000, scoped, tag = 'internal scratch']
  %s0 = inlined_call_operand.vmem [shape: f32[16,32], index: 0, kind: input, shape index: {}]
  %s1 = inlined_call_operand.vmem [shape: f32[1,32], index: 1, kind: input, shape index: {}]
  %s2 = inlined_call_operand.vmem [shape: f32[1,32], index: 2, kind: input, shape index: {}]
  %s3 = inlined_call_operand.vmem [shape: f32[32,64], index: 3, kind: input, shape index: {}]
  %s4 = inlined_call_operand.vmem [shape: f32[1,64], index: 4, kind: input, shape index: {}]
  %s5 = inlined_call_operand.vmem [shape: f32[16,64], index: 5, kind: output, shape index: {}]
  %s6 = sld [smem:[#allocation0]]
  $region30: #{decoder_layer.14} parent=0
    _
  %s8 = ssub.s32 1, %s6
  %s9 = scalar_select 0, %s8, %s6
  // Predicated region
  $region2: #{decoder_layer.14} parent=0 // pred_check
    _
  $region3: #{decoder_layer.14} parent=0 // pred_check_branch
    %11 = sbr.rel (0) target = $region5
  $region4: #{decoder_layer.14} parent=0 // pred_region
    _
  $region5: #{decoder_layer.14} parent=0 // pred_fallthru
    _
  // Predicated region
  $region6: #{decoder_layer.14} parent=0 // pred_check
    _
  $region7: #{decoder_layer.14} parent=0 // pred_check_branch
    %13 = sbr.rel (0) target = $region9
  $region8: #{decoder_layer.14} parent=0 // pred_region
    _
  $region9: #{decoder_layer.14} parent=0 // pred_fallthru
    _
  // Predicated region
  $region10: #{decoder_layer.14} parent=0 // pred_check
    _
  $region11: #{decoder_layer.14} parent=0 // pred_check_branch
    %15 = sbr.rel (0) target = $region13
  $region12: #{decoder_layer.14} parent=0 // pred_region
    _
  $region13: #{decoder_layer.14} parent=0 // pred_fallthru
    _
  // Predicated region
  $region14: #{decoder_layer.14} parent=0 // pred_check
    _
  $region15: #{decoder_layer.14} parent=0 // pred_check_branch
    %17 = sbr.rel (0) target = $region17
  $region16: #{decoder_layer.14} parent=0 // pred_region
    _
  $region17: #{decoder_layer.14} parent=0 // pred_fallthru
    _
  // Predicated region
  $region18: #{decoder_layer.14} parent=0 // pred_check
    _
  $region19: #{decoder_layer.14} parent=0 // pred_check_branch
    %19 = sbr.rel (0) target = $region21
  $region20: #{decoder_layer.14} parent=0 // pred_region
    _
  $region21: #{decoder_layer.14} parent=0 // pred_fallthru
    _
  %v20 = vld [vmem:[%s0] sm:$0xff]
  %v21 = vld [vmem:[%s0 + $0x8] sm:$0xff]
  %vm22 = vcmask 261120
  %v23 = vsel %vm22, %v20, 0.0
  %24 = vadd.xlane.f32.xlu0 %v23
  %v25 = vpop.xlane.xlu0 %24
  %v26 = vsel %vm22, %v21, 0.0
  %27 = vadd.xlane.f32.xlu0 %v26
  %v28 = vpop.xlane.xlu0 %27
  %v29 = vrcp.pop 32.0
  %v30 = vmul.f32 %v25, %v29
  %v31 = vmul.f32 %v28, %v29
  %v32 = vsub.f32 %v20, %v30
  %v33 = vsub.f32 %v21, %v31
  %v34 = vmul.f32 %v32, %v32
  %v35 = vmul.f32 %v33, %v33
  %v36 = vsel %vm22, %v34, 0.0
  %37 = vadd.xlane.f32.xlu0 %v36
  %v38 = vpop.xlane.xlu0 %37
  %v39 = vsel %vm22, %v35, 0.0
  %40 = vadd.xlane.f32.xlu0 %v39
  %v41 = vpop.xlane.xlu0 %40
  %v42 = vmul.f32 %v38, %v29
  %v43 = vmul.f32 %v41, %v29
  %v44 = vadd.f32 %v42, 1e-05
  %v45 = vadd.f32 %v43, 1e-05
  %v46 = vrsqrt.pop %v44
  %v47 = vrsqrt.pop %v45
  %v48 = vmul.f32 %v32, %v46
  %v49 = vmul.f32 %v33, %v47
  %v50 = vld [vmem:[%s1] sm:$0x1]
  %v52 = vlaneseq
  %v53 = vshrl.u32 %v52, 7
  %v54 = vsub.s32 0, %v53
  %v55 = vrot.slane %v50, %v54
  %v57 = vmul.f32 %v48, %v55
  %v58 = vmul.f32 %v49, %v55
  %v59 = vld [vmem:[%s2] sm:$0x1]
  %v61 = vlaneseq
  %v62 = vshrl.u32 %v61, 7
  %v63 = vsub.s32 0, %v62
  %v64 = vrot.slane %v59, %v63
  %v66 = vadd.f32 %v57, %v64
  %v67 = vadd.f32 %v58, %v64
  %v68 = vld [vmem:[%s3] sm:$0xff]
  %v69 = vld [vmem:[%s3 + $0x8] sm:$0xff]
  %v70 = vld [vmem:[%s3 + $0x10] sm:$0xff]
  %v71 = vld [vmem:[%s3 + $0x18] sm:$0xff]
  %v72 = vld [vmem:[%s4] sm:$0x1]
  %v74 = vlaneseq
  %v75 = vshrl.u32 %v74, 7
  %v76 = vsub.s32 0, %v75
  %v77 = vrot.slane %v72, %v76
  %v80 = vsel %vm22, %v66, 0
  %v83 = vsel %vm22, %v67, 0
  %85 = vmatprep.subr.mxu0 0.0
  %86 = vmatpush1.msra.mxu0 %v68
  %87 = vmatprep.subr.mxu0 0.0
  %88 = vmatpush1.msra.mxu0 %v69
  %89 = vmatprep.subr.mxu0 0.0
  %90 = vmatpush1.msra.mxu0 %v70
  %91 = vmatprep.subr.mxu0 0.0
  %92 = vmatpush1.msra.mxu0 %v71
  %93 = vmatprep.subr.mxu0 0.0
  %94 = vmatpush1.msra.mxu0 0.0
  %95 = vmatprep.subr.mxu0 0.0
  %96 = vmatpush1.msra.mxu0 0.0
  %97 = vmatprep.subr.mxu0 0.0
  %98 = vmatpush1.msra.mxu0 0.0
  %99 = vmatprep.subr.mxu0 0.0
  %100 = vmatpush1.msra.mxu0 0.0
  %101 = vmatprep.subr.mxu0 0.0
  %102 = vmatpush1.msra.mxu0 0.0
  %103 = vmatprep.subr.mxu0 0.0
  %104 = vmatpush1.msra.mxu0 0.0
  %105 = vmatprep.subr.mxu0 0.0
  %106 = vmatpush1.msra.mxu0 0.0
  %107 = vmatprep.subr.mxu0 0.0
  %108 = vmatpush1.msra.mxu0 0.0
  %109 = vmatprep.subr.mxu0 0.0
  %110 = vmatpush1.msra.mxu0 0.0
  %111 = vmatprep.subr.mxu0 0.0
  %112 = vmatpush1.msra.mxu0 0.0
  %113 = vmatprep.subr.mxu0 0.0
  %114 = vmatpush1.msra.mxu0 0.0
  %115 = vmatprep.subr.mxu0 0.0
  %116 = vmatpush1.msra.mxu0 0.0
  %117 = vmatprep.subr.mxu0 0.0
  %118 = vmatpush1.msra.mxu0 0.0
  %119 = vmatprep.subr.mxu0 0.0
  %120 = vmatpush1.msra.mxu0 0.0
  %121 = vmatprep.subr.mxu0 0.0
  %122 = vmatpush1.msra.mxu0 0.0
  %123 = vmatprep.subr.mxu0 0.0
  %124 = vmatpush1.msra.mxu0 0.0
  %125 = vmatprep.subr.mxu0 0.0
  %126 = vmatpush1.msra.mxu0 0.0
  %127 = vmatprep.subr.mxu0 0.0
  %128 = vmatpush1.msra.mxu0 0.0
  %129 = vmatprep.subr.mxu0 0.0
  %130 = vmatpush1.msra.mxu0 0.0
  %131 = vmatprep.subr.mxu0 0.0
  %132 = vmatpush1.msra.mxu0 0.0
  %133 = vmatprep.subr.mxu0 0.0
  %134 = vmatpush1.msra.mxu0 0.0
  %135 = vmatprep.subr.mxu0 0.0
  %136 = vmatpush1.msra.mxu0 0.0
  %137 = vmatprep.subr.mxu0 0.0
  %138 = vmatpush1.msra.mxu0 0.0
  %139 = vmatprep.subr.mxu0 0.0
  %140 = vmatpush1.msra.mxu0 0.0
  %141 = vmatprep.subr.mxu0 0.0
  %142 = vmatpush1.msra.mxu0 0.0
  %143 = vmatprep.subr.mxu0 0.0
  %144 = vmatpush1.msra.mxu0 0.0
  %145 = vmatprep.subr.mxu0 0.0
  %146 = vmatpush1.msra.mxu0 0.0
  %147 = vmatprep.subr.mxu0 0.0
  %148 = vmatpush1.msra.mxu0 0.0
  %149 = vmatprep.mubr.f32.mxu0 0.0
  %150 = vmatmul.mubr.f32.gmra.mrb[0].mxu0 %v80
  %v151 = vpop.f32.mrb[0].mxu0
  %v152 = vadd.f32 %v77, %v151
  %v153 = vpop.f32.mrb[0].mxu0
  %154 = vmatprep.mubr.f32.mxu0 0.0
  %155 = vmatmul.mubr.f32.gmra.mrb[0].mxu0 %v83
  %v156 = vpop.f32.mrb[0].mxu0
  %v157 = vadd.f32 %v77, %v156
  %v158 = vpop.f32.mrb[0].mxu0
  %159 = vdwg.mxu0
  %v160 = vmax.f32 %v152, 0.0
  %v161 = vmax.f32 %v157, 0.0
  %vm162 = vcmask 523264
  %163 = vst.msk [vmem:[%s5] sm:$0xff] %vm162, %v160
  %164 = vst.msk [vmem:[%s5 + $0x8] sm:$0xff] %vm162, %v161
  // Predicated region
  $region22: #{decoder_layer.14} parent=0 // pred_check
    _
  $region23: #{decoder_layer.14} parent=0 // pred_check_branch
    %166 = sbr.rel (0) target = $region25
  $region24: #{decoder_layer.14} parent=0 // pred_region
    _
  $region25: #{decoder_layer.14} parent=0 // pred_fallthru
    _
  // Predicated region
  $region26: #{decoder_layer.14} parent=0 // pred_check
    _
  $region27: #{decoder_layer.14} parent=0 // pred_check_branch
    %168 = sbr.rel (0) target = $region29
  $region28: #{decoder_layer.14} parent=0 // pred_region
    _
  $region29: #{decoder_layer.14} parent=0 // pred_fallthru
    _

// kernel: decoder_layer.9
$region0: #{decoder_layer.9}
  #allocation0 [shape = 'u32[]', space=smem, size = 0x4, offset = 0x4, fixed_abs, tag = 'smem constant byte address 0x4 - core index']
  #allocation1 [shape = 'u32[144,128]{1,0:T(1,128)}', space=vmem, size = 0x12000, scoped, tag = 'internal scratch']
  %s0 = inlined_call_operand.vmem [shape: f32[16,96], index: 0, kind: input, shape index: {}]
  %s1 = inlined_call_operand.vmem [shape: f32[8,8], index: 1, kind: input, shape index: {}]
  %s2 = inlined_call_operand.vmem [shape: f32[16,32], index: 2, kind: output, shape index: {}]
  %s3 = sld [smem:[#allocation0]]
  $region41: #{decoder_layer.9} parent=0
    _
  %s5 = ssub.s32 1, %s3
  %s6 = scalar_select 0, %s5, %s3
  loop: start=0, step=1, limit=4
  $region2: #{decoder_layer.9} parent=0 // loop_pre_header
    _
  $region3: #{decoder_layer.9} parent=0 // loop_header
    %s8 = sphi 0, %s12
    %p9 = scmp.ge.s32.totalorder %s8, 4
    %s18 = sphi 0, %s20
    %s21 = sphi 0, %s18
    %s22 = sphi 0, %s21
    %s38 = sphi 0, %s22
    %s42 = sphi 0, %s42
    %s44 = sphi 0, %s42
    %s45 = sphi 0, %s44
    %s59 = sphi 0, %s45
    %s65 = sphi 0, %s67
    %s68 = sphi 0, %s65
    %s69 = sphi 0, %s68
    %s85 = sphi 0, %s69
  $region4: #{decoder_layer.9} parent=0 // loop_header_branch
    %11 = sbr.rel (%p9) target = $region8
  $region5: #{decoder_layer.9} parent=0 // loop_body
    %s13 = ssub.s32 %s8, 1
    %s14 = ssub.s32 %s8, 2
    %s15 = sadd.s32 %s8, 1
    %s16 = ssub.s32 %s8, %s15
    %p17 = scmp.eq.s32.totalorder %s16, 0
    %s19 = sadd.s32 %s18, 1
    %s20 = scalar_select %p17, %s18, %s19
    %p23 = pneg %p17
    %p24 = scmp.eq.s32.totalorder %s8, 1
    %p25 = por %p23, %p24
    %p26 = scmp.ne.s32.totalorder %s18, %s21
    %p27 = scmp.eq.s32.totalorder %s8, 0
    %p28 = por %p26, %p27
    %p29 = scmp.ne.s32.totalorder %s18, %s21
    %p30 = scmp.eq.s32.totalorder %s13, 1
    %p31 = por %p29, %p30
    %p32 = scmp.ne.s32.totalorder %s21, %s22
    %p33 = scmp.eq.s32.totalorder %s13, 0
    %p34 = por %p32, %p33
    %p35 = scmp.ne.s32.totalorder %s21, %s22
    %p36 = scmp.eq.s32.totalorder %s14, 1
    %p37 = por %p35, %p36
    %p39 = scmp.ne.s32.totalorder %s22, %s38
    %p40 = scmp.eq.s32.totalorder %s14, 0
    %p41 = por %p39, %p40
    %s43 = sadd.s32 %s42, 1
    %p46 = scmp.eq.s32.totalorder %s8, 1
    %p47 = scmp.ne.s32.totalorder %s42, %s44
    %p48 = scmp.eq.s32.totalorder %s8, 0
    %p49 = por %p47, %p48
    %p50 = scmp.ne.s32.totalorder %s42, %s44
    %p51 = scmp.eq.s32.totalorder %s13, 1
    %p52 = por %p50, %p51
    %p53 = scmp.ne.s32.totalorder %s44, %s45
    %p54 = scmp.eq.s32.totalorder %s13, 0
    %p55 = por %p53, %p54
    %p56 = scmp.ne.s32.totalorder %s44, %s45
    %p57 = scmp.eq.s32.totalorder %s14, 1
    %p58 = por %p56, %p57
    %p60 = scmp.ne.s32.totalorder %s45, %s59
    %p61 = scmp.eq.s32.totalorder %s14, 0
    %p62 = por %p60, %p61
    %s63 = ssub.s32 %s8, %s15
    %p64 = scmp.eq.s32.totalorder %s63, 0
    %s66 = sadd.s32 %s65, 1
    %s67 = scalar_select %p64, %s65, %s66
    %p70 = pneg %p64
    %p71 = scmp.eq.s32.totalorder %s8, 1
    %p72 = por %p70, %p71
    %p73 = scmp.ne.s32.totalorder %s65, %s68
    %p74 = scmp.eq.s32.totalorder %s8, 0
    %p75 = por %p73, %p74
    %p76 = scmp.ne.s32.totalorder %s65, %s68
    %p77 = scmp.eq.s32.totalorder %s13, 1
    %p78 = por %p76, %p77
    %p79 = scmp.ne.s32.totalorder %s68, %s69
    %p80 = scmp.eq.s32.totalorder %s13, 0
    %p81 = por %p79, %p80
    %p82 = scmp.ne.s32.totalorder %s68, %s69
    %p83 = scmp.eq.s32.totalorder %s14, 1
    %p84 = por %p82, %p83
    %p86 = scmp.ne.s32.totalorder %s69, %s85
    %p87 = scmp.eq.s32.totalorder %s14, 0
    %p88 = por %p86, %p87
    %p89 = scmp.le.s32.totalorder 1, %s8
    %p90 = scmp.lt.s32.totalorder %s8, 3
    %p91 = pnand %p89, %p90
    %p92 = pneg %p91
    // Predicated region
    $region9: #{decoder_layer.9} parent=5 // pred_check
      _
    $region10: #{decoder_layer.9} parent=5 // pred_check_branch
      %94 = sbr.rel (%p91) target = $region12
    $region11: #{decoder_layer.9} parent=5 // pred_region
      %s95 = ssub.s32 %s8, 1
      // Predicated region
      $region13: #{decoder_layer.9} parent=11 // pred_check
        %p96 = pneg %p55
      $region14: #{decoder_layer.9} parent=11 // pred_check_branch
        %98 = sbr.rel (%p96) target = $region16
      $region15: #{decoder_layer.9} parent=11 // pred_region
        _
      $region16: #{decoder_layer.9} parent=11 // pred_fallthru
        _
    $region12: #{decoder_layer.9} parent=5 // pred_fallthru
      _
    %p99 = scmp.lt.s32.totalorder %s8, 2
    // Predicated region
    $region17: #{decoder_layer.9} parent=5 // pred_check
      %p100 = pneg %p99
    $region18: #{decoder_layer.9} parent=5 // pred_check_branch
      %102 = sbr.rel (%p100) target = $region20
    $region19: #{decoder_layer.9} parent=5 // pred_region
      // Predicated region
      $region21: #{decoder_layer.9} parent=19 // pred_check
        %p103 = pneg %p28
      $region22: #{decoder_layer.9} parent=19 // pred_check_branch
        %105 = sbr.rel (%p103) target = $region24
      $region23: #{decoder_layer.9} parent=19 // pred_region
        %p106 = scmp.lt.s32.totalorder %s8, 1
        %s107 = scalar_select %p106, %s8, 1
        %s108 = smul.addr %s107, 8
        %s109 = scalar_lea.vmem %s0, %s108
      $region24: #{decoder_layer.9} parent=19 // pred_fallthru
        _
    $region20: #{decoder_layer.9} parent=5 // pred_fallthru
      _
    %p110 = scmp.le.s32.totalorder 1, %s8
    %p111 = scmp.lt.s32.totalorder %s8, 3
    %p112 = pnand %p110, %p111
    %p113 = pneg %p112
    // Predicated region
    $region25: #{decoder_layer.9} parent=5 // pred_check
      _
    $region26: #{decoder_layer.9} parent=5 // pred_check_branch
      %115 = sbr.rel (%p112) target = $region28
    $region27: #{decoder_layer.9} parent=5 // pred_region
      %s116 = ssub.s32 %s8, 1
      %p117 = scmp.lt.s32.totalorder %s13, 1
      %s118 = scalar_select %p117, %s13, 1
      %s119 = smul.addr %s118, 8
      %s120 = scalar_lea.vmem %s0, %s119
      %p121 = pneg %p34
      %p122 = pneg %p31
      %p123 = pneg %p55
      %p124 = pneg %p52
      %p125 = pneg %p81
      %p126 = pneg %p78
      %p127 = scmp.lt.s32.totalorder %s13, 1
      %s128 = scalar_select %p127, %s13, 1
      %s129 = smul.addr %s128, 8
      %s130 = scalar_lea.vmem %s2, %s129
      %p131 = scmp.lt.s32.totalorder %s13, 1
      %s132 = scalar_select %p131, %s13, 1
      %s133 = smul.addr %s132, 8
      %s134 = scalar_lea.vmem %s0, %s133
      %p135 = scmp.lt.s32.totalorder %s13, 1
      %s136 = scalar_select %p135, %s13, 1
      %s137 = smul.addr %s136, 8
      %s138 = scalar_lea.vmem %s2, %s137
      %v139 = vld [vmem:[%s134] sm:$0xff]
      %v140 = vld [vmem:[%s1] sm:$0xff]
      %142 = vrot.lane.b32.xlu0 %v139, 96
      %v143 = vpop.permute.xlu0 %142
      %vm144 = vcmask 64512
      %v145 = vsel %vm144, %v139, 0
      %v147 = vsel %vm144, %v143, 0
      %149 = vmatprep.subr.mxu0 0.0
      %150 = vmatpush1.xpose.msra.mxu0 %v147
      %151 = vmatprep.subr.mxu0 0.0
      %152 = vmatpush1.xpose.msra.mxu0 0.0
      %153 = vmatprep.subr.mxu0 0.0
      %154 = vmatpush1.xpose.msra.mxu0 0.0
      %155 = vmatprep.subr.mxu0 0.0
      %156 = vmatpush1.xpose.msra.mxu0 0.0
      %157 = vmatprep.subr.mxu0 0.0
      %158 = vmatpush1.xpose.msra.mxu0 0.0
      %159 = vmatprep.subr.mxu0 0.0
      %160 = vmatpush1.xpose.msra.mxu0 0.0
      %161 = vmatprep.subr.mxu0 0.0
      %162 = vmatpush1.xpose.msra.mxu0 0.0
      %163 = vmatprep.subr.mxu0 0.0
      %164 = vmatpush1.xpose.msra.mxu0 0.0
      %165 = vmatprep.subr.mxu0 0.0
      %166 = vmatpush1.xpose.msra.mxu0 0.0
      %167 = vmatprep.subr.mxu0 0.0
      %168 = vmatpush1.xpose.msra.mxu0 0.0
      %169 = vmatprep.subr.mxu0 0.0
      %170 = vmatpush1.xpose.msra.mxu0 0.0
      %171 = vmatprep.subr.mxu0 0.0
      %172 = vmatpush1.xpose.msra.mxu0 0.0
      %173 = vmatprep.subr.mxu0 0.0
      %174 = vmatpush1.xpose.msra.mxu0 0.0
      %175 = vmatprep.subr.mxu0 0.0
      %176 = vmatpush1.xpose.msra.mxu0 0.0
      %177 = vmatprep.subr.mxu0 0.0
      %178 = vmatpush1.xpose.msra.mxu0 0.0
      %179 = vmatprep.subr.mxu0 0.0
      %180 = vmatpush1.xpose.msra.mxu0 0.0
      %181 = vmatprep.subr.mxu0 0.0
      %182 = vmatpush1.xpose.msra.mxu0 0.0
      %183 = vmatprep.subr.mxu0 0.0
      %184 = vmatpush1.xpose.msra.mxu0 0.0
      %185 = vmatprep.subr.mxu0 0.0
      %186 = vmatpush1.xpose.msra.mxu0 0.0
      %187 = vmatprep.subr.mxu0 0.0
      %188 = vmatpush1.xpose.msra.mxu0 0.0
      %189 = vmatprep.subr.mxu0 0.0
      %190 = vmatpush1.xpose.msra.mxu0 0.0
      %191 = vmatprep.subr.mxu0 0.0
      %192 = vmatpush1.xpose.msra.mxu0 0.0
      %193 = vmatprep.subr.mxu0 0.0
      %194 = vmatpush1.xpose.msra.mxu0 0.0
      %195 = vmatprep.subr.mxu0 0.0
      %196 = vmatpush1.xpose.msra.mxu0 0.0
      %197 = vmatprep.subr.mxu0 0.0
      %198 = vmatpush1.xpose.msra.mxu0 0.0
      %199 = vmatprep.subr.mxu0 0.0
      %200 = vmatpush1.xpose.msra.mxu0 0.0
      %201 = vmatprep.subr.mxu0 0.0
      %202 = vmatpush1.xpose.msra.mxu0 0.0
      %203 = vmatprep.subr.mxu0 0.0
      %204 = vmatpush1.xpose.msra.mxu0 0.0
      %205 = vmatprep.subr.mxu0 0.0
      %206 = vmatpush1.xpose.msra.mxu0 0.0
      %207 = vmatprep.subr.mxu0 0.0
      %208 = vmatpush1.xpose.msra.mxu0 0.0
      %209 = vmatprep.subr.mxu0 0.0
      %210 = vmatpush1.xpose.msra.mxu0 0.0
      %211 = vmatprep.subr.mxu0 0.0
      %212 = vmatpush1.xpose.msra.mxu0 0.0
      %213 = vmatprep.mubr.f32.mxu0 0.0
      %214 = vmatmul.mubr.f32.gmra.mrb[0].mxu0 %v145
      %v215 = vpop.f32.mrb[0].mxu0
      %v216 = vadd.f32 0.0, %v215
      %v217 = vpop.f32.mrb[0].mxu0
      %218 = vdwg.mxu0
      %v219 = vmul.f32 %v216, 0.35355338
      %v220 = vadd.f32 %v219, %v140
      %v221 = vsel %vm144, %v220, -inf
      %222 = vmax.xlane.f32.xlu0 %v221
      %v223 = vpop.xlane.xlu0 %222
      %v224 = vsub.f32 %v220, %v223
      %v225 = vmul.f32 %v224, 1.442695
      %v226 = vpow.pop %v225
      %v227 = vsel %vm144, %v226, 0.0
      %228 = vadd.xlane.f32.xlu0 %v227
      %v229 = vpop.xlane.xlu0 %228
      %v230 = vrcp.pop %v229
      %231 = vrot.lane.b32.xlu0 %v139, 64
      %v232 = vpop.permute.xlu0 %231
      %v235 = vsel %vm144, %v226, 0
      %237 = vmatprep.subr.mxu0 0.0
      %238 = vmatpush1.msra.mxu0 %v232
      %239 = vmatprep.subr.mxu0 0.0
      %240 = vmatpush1.msra.mxu0 0.0
      %241 = vmatprep.subr.mxu0 0.0
      %242 = vmatpush1.msra.mxu0 0.0
      %243 = vmatprep.subr.mxu0 0.0
      %244 = vmatpush1.msra.mxu0 0.0
      %245 = vmatprep.subr.mxu0 0.0
      %246 = vmatpush1.msra.mxu0 0.0
      %247 = vmatprep.subr.mxu0 0.0
      %248 = vmatpush1.msra.mxu0 0.0
      %249 = vmatprep.subr.mxu0 0.0
      %250 = vmatpush1.msra.mxu0 0.0
      %251 = vmatprep.subr.mxu0 0.0
      %252 = vmatpush1.msra.mxu0 0.0
      %253 = vmatprep.subr.mxu0 0.0
      %254 = vmatpush1.msra.mxu0 0.0
      %255 = vmatprep.subr.mxu0 0.0
      %256 = vmatpush1.msra.mxu0 0.0
      %257 = vmatprep.subr.mxu0 0.0
      %258 = vmatpush1.msra.mxu0 0.0
      %259 = vmatprep.subr.mxu0 0.0
      %260 = vmatpush1.msra.mxu0 0.0
      %261 = vmatprep.subr.mxu0 0.0
      %262 = vmatpush1.msra.mxu0 0.0
      %263 = vmatprep.subr.mxu0 0.0
      %264 = vmatpush1.msra.mxu0 0.0
      %265 = vmatprep.subr.mxu0 0.0
      %266 = vmatpush1.msra.mxu0 0.0
      %267 = vmatprep.subr.mxu0 0.0
      %268 = vmatpush1.msra.mxu0 0.0
      %269 = vmatprep.subr.mxu0 0.0
      %270 = vmatpush1.msra.mxu0 0.0
      %271 = vmatprep.subr.mxu0 0.0
      %272 = vmatpush1.msra.mxu0 0.0
      %273 = vmatprep.subr.mxu0 0.0
      %274 = vmatpush1.msra.mxu0 0.0
      %275 = vmatprep.subr.mxu0 0.0
      %276 = vmatpush1.msra.mxu0 0.0
      %277 = vmatprep.subr.mxu0 0.0
      %278 = vmatpush1.msra.mxu0 0.0
      %279 = vmatprep.subr.mxu0 0.0
      %280 = vmatpush1.msra.mxu0 0.0
      %281 = vmatprep.subr.mxu0 0.0
      %282 = vmatpush1.msra.mxu0 0.0
      %283 = vmatprep.subr.mxu0 0.0
      %284 = vmatpush1.msra.mxu0 0.0
      %285 = vmatprep.subr.mxu0 0.0
      %286 = vmatpush1.msra.mxu0 0.0
      %287 = vmatprep.subr.mxu0 0.0
      %288 = vmatpush1.msra.mxu0 0.0
      %289 = vmatprep.subr.mxu0 0.0
      %290 = vmatpush1.msra.mxu0 0.0
      %291 = vmatprep.subr.mxu0 0.0
      %292 = vmatpush1.msra.mxu0 0.0
      %293 = vmatprep.subr.mxu0 0.0
      %294 = vmatpush1.msra.mxu0 0.0
      %295 = vmatprep.subr.mxu0 0.0
      %296 = vmatpush1.msra.mxu0 0.0
      %297 = vmatprep.subr.mxu0 0.0
      %298 = vmatpush1.msra.mxu0 0.0
      %299 = vmatprep.subr.mxu0 0.0
      %300 = vmatpush1.msra.mxu0 0.0
      %301 = vmatprep.mubr.f32.mxu0 0.0
      %302 = vmatmul.mubr.f32.gmra.mrb[0].mxu0 %v235
      %v303 = vpop.f32.mrb[0].mxu0
      %v304 = vadd.f32 0.0, %v303
      %v305 = vpop.f32.mrb[0].mxu0
      %306 = vdwg.mxu0
      %v307 = vmul.f32 %v304, %v230
      %308 = vrot.lane.b32.xlu0 %v139, 120
      %v309 = vpop.permute.xlu0 %308
      %310 = vrot.lane.b32.xlu0 %v139, 88
      %v311 = vpop.permute.xlu0 %310
      %v312 = vsel %vm144, %v309, 0
      %v314 = vsel %vm144, %v311, 0
      %316 = vmatprep.subr.mxu0 0.0
      %317 = vmatpush1.xpose.msra.mxu0 %v314
      %318 = vmatprep.subr.mxu0 0.0
      %319 = vmatpush1.xpose.msra.mxu0 0.0
      %320 = vmatprep.subr.mxu0 0.0
      %321 = vmatpush1.xpose.msra.mxu0 0.0
      %322 = vmatprep.subr.mxu0 0.0
      %323 = vmatpush1.xpose.msra.mxu0 0.0
      %324 = vmatprep.subr.mxu0 0.0
      %325 = vmatpush1.xpose.msra.mxu0 0.0
      %326 = vmatprep.subr.mxu0 0.0
      %327 = vmatpush1.xpose.msra.mxu0 0.0
      %328 = vmatprep.subr.mxu0 0.0
      %329 = vmatpush1.xpose.msra.mxu0 0.0
      %330 = vmatprep.subr.mxu0 0.0
      %331 = vmatpush1.xpose.msra.mxu0 0.0
      %332 = vmatprep.subr.mxu0 0.0
      %333 = vmatpush1.xpose.msra.mxu0 0.0
      %334 = vmatprep.subr.mxu0 0.0
      %335 = vmatpush1.xpose.msra.mxu0 0.0
      %336 = vmatprep.subr.mxu0 0.0
      %337 = vmatpush1.xpose.msra.mxu0 0.0
      %338 = vmatprep.subr.mxu0 0.0
      %339 = vmatpush1.xpose.msra.mxu0 0.0
      %340 = vmatprep.subr.mxu0 0.0
      %341 = vmatpush1.xpose.msra.mxu0 0.0
      %342 = vmatprep.subr.mxu0 0.0
      %343 = vmatpush1.xpose.msra.mxu0 0.0
      %344 = vmatprep.subr.mxu0 0.0
      %345 = vmatpush1.xpose.msra.mxu0 0.0
      %346 = vmatprep.subr.mxu0 0.0
      %347 = vmatpush1.xpose.msra.mxu0 0.0
      %348 = vmatprep.subr.mxu0 0.0
      %349 = vmatpush1.xpose.msra.mxu0 0.0
      %350 = vmatprep.subr.mxu0 0.0
      %351 = vmatpush1.xpose.msra.mxu0 0.0
      %352 = vmatprep.subr.mxu0 0.0
      %353 = vmatpush1.xpose.msra.mxu0 0.0
      %354 = vmatprep.subr.mxu0 0.0
      %355 = vmatpush1.xpose.msra.mxu0 0.0
      %356 = vmatprep.subr.mxu0 0.0
      %357 = vmatpush1.xpose.msra.mxu0 0.0
      %358 = vmatprep.subr.mxu0 0.0
      %359 = vmatpush1.xpose.msra.mxu0 0.0
      %360 = vmatprep.subr.mxu0 0.0
      %361 = vmatpush1.xpose.msra.mxu0 0.0
      %362 = vmatprep.subr.mxu0 0.0
      %363 = vmatpush1.xpose.msra.mxu0 0.0
      %364 = vmatprep.subr.mxu0 0.0
      %365 = vmatpush1.xpose.msra.mxu0 0.0
      %366 = vmatprep.subr.mxu0 0.0
      %367 = vmatpush1.xpose.msra.mxu0 0.0
      %368 = vmatprep.subr.mxu0 0.0
      %369 = vmatpush1.xpose.msra.mxu0 0.0
      %370 = vmatprep.subr.mxu0 0.0
      %371 = vmatpush1.xpose.msra.mxu0 0.0
      %372 = vmatprep.subr.mxu0 0.0
      %373 = vmatpush1.xpose.msra.mxu0 0.0
      %374 = vmatprep.subr.mxu0 0.0
      %375 = vmatpush1.xpose.msra.mxu0 0.0
      %376 = vmatprep.subr.mxu0 0.0
      %377 = vmatpush1.xpose.msra.mxu0 0.0
      %378 = vmatprep.subr.mxu0 0.0
      %379 = vmatpush1.xpose.msra.mxu0 0.0
      %380 = vmatprep.mubr.f32.mxu0 0.0
      %381 = vmatmul.mubr.f32.gmra.mrb[0].mxu0 %v312
      %v382 = vpop.f32.mrb[0].mxu0
      %v383 = vadd.f32 0.0, %v382
      %v384 = vpop.f32.mrb[0].mxu0
      %385 = vdwg.mxu0
      %v386 = vmul.f32 %v383, 0.35355338
      %v387 = vadd.f32 %v386, %v140
      %v388 = vsel %vm144, %v387, -inf
      %389 = vmax.xlane.f32.xlu0 %v388
      %v390 = vpop.xlane.xlu0 %389
      %v391 = vsub.f32 %v387, %v390
      %v392 = vmul.f32 %v391, 1.442695
      %v393 = vpow.pop %v392
      %v394 = vsel %vm144, %v393, 0.0
      %395 = vadd.xlane.f32.xlu0 %v394
      %v396 = vpop.xlane.xlu0 %395
      %v397 = vrcp.pop %v396
      %398 = vrot.lane.b32.xlu0 %v139, 56
      %v399 = vpop.permute.xlu0 %398
      %v402 = vsel %vm144, %v393, 0
      %404 = vmatprep.subr.mxu0 0.0
      %405 = vmatpush1.msra.mxu0 %v399
      %406 = vmatprep.subr.mxu0 0.0
      %407 = vmatpush1.msra.mxu0 0.0
      %408 = vmatprep.subr.mxu0 0.0
      %409 = vmatpush1.msra.mxu0 0.0
      %410 = vmatprep.subr.mxu0 0.0
      %411 = vmatpush1.msra.mxu0 0.0
      %412 = vmatprep.subr.mxu0 0.0
      %413 = vmatpush1.msra.mxu0 0.0
      %414 = vmatprep.subr.mxu0 0.0
      %415 = vmatpush1.msra.mxu0 0.0
      %416 = vmatprep.subr.mxu0 0.0
      %417 = vmatpush1.msra.mxu0 0.0
      %418 = vmatprep.subr.mxu0 0.0
      %419 = vmatpush1.msra.mxu0 0.0
      %420 = vmatprep.subr.mxu0 0.0
      %421 = vmatpush1.msra.mxu0 0.0
      %422 = vmatprep.subr.mxu0 0.0
      %423 = vmatpush1.msra.mxu0 0.0
      %424 = vmatprep.subr.mxu0 0.0
      %425 = vmatpush1.msra.mxu0 0.0
      %426 = vmatprep.subr.mxu0 0.0
      %427 = vmatpush1.msra.mxu0 0.0
      %428 = vmatprep.subr.mxu0 0.0
      %429 = vmatpush1.msra.mxu0 0.0
      %430 = vmatprep.subr.mxu0 0.0
      %431 = vmatpush1.msra.mxu0 0.0
      %432 = vmatprep.subr.mxu0 0.0
      %433 = vmatpush1.msra.mxu0 0.0
      %434 = vmatprep.subr.mxu0 0.0
      %435 = vmatpush1.msra.mxu0 0.0
      %436 = vmatprep.subr.mxu0 0.0
      %437 = vmatpush1.msra.mxu0 0.0
      %438 = vmatprep.subr.mxu0 0.0
      %439 = vmatpush1.msra.mxu0 0.0
      %440 = vmatprep.subr.mxu0 0.0
      %441 = vmatpush1.msra.mxu0 0.0
      %442 = vmatprep.subr.mxu0 0.0
      %443 = vmatpush1.msra.mxu0 0.0
      %444 = vmatprep.subr.mxu0 0.0
      %445 = vmatpush1.msra.mxu0 0.0
      %446 = vmatprep.subr.mxu0 0.0
      %447 = vmatpush1.msra.mxu0 0.0
      %448 = vmatprep.subr.mxu0 0.0
      %449 = vmatpush1.msra.mxu0 0.0
      %450 = vmatprep.subr.mxu0 0.0
      %451 = vmatpush1.msra.mxu0 0.0
      %452 = vmatprep.subr.mxu0 0.0
      %453 = vmatpush1.msra.mxu0 0.0
      %454 = vmatprep.subr.mxu0 0.0
      %455 = vmatpush1.msra.mxu0 0.0
      %456 = vmatprep.subr.mxu0 0.0
      %457 = vmatpush1.msra.mxu0 0.0
      %458 = vmatprep.subr.mxu0 0.0
      %459 = vmatpush1.msra.mxu0 0.0
      %460 = vmatprep.subr.mxu0 0.0
      %461 = vmatpush1.msra.mxu0 0.0
      %462 = vmatprep.subr.mxu0 0.0
      %463 = vmatpush1.msra.mxu0 0.0
      %464 = vmatprep.subr.mxu0 0.0
      %465 = vmatpush1.msra.mxu0 0.0
      %466 = vmatprep.subr.mxu0 0.0
      %467 = vmatpush1.msra.mxu0 0.0
      %468 = vmatprep.mubr.f32.mxu0 0.0
      %469 = vmatmul.mubr.f32.gmra.mrb[0].mxu0 %v402
      %v470 = vpop.f32.mrb[0].mxu0
      %v471 = vadd.f32 0.0, %v470
      %v472 = vpop.f32.mrb[0].mxu0
      %473 = vdwg.mxu0
      %v474 = vmul.f32 %v471, %v397
      %475 = vrot.lane.b32.xlu0 %v139, 112
      %v476 = vpop.permute.xlu0 %475
      %477 = vrot.lane.b32.xlu0 %v139, 80
      %v478 = vpop.permute.xlu0 %477
      %v479 = vsel %vm144, %v476, 0
      %v481 = vsel %vm144, %v478, 0
      %483 = vmatprep.subr.mxu0 0.0
      %484 = vmatpush1.xpose.msra.mxu0 %v481
      %485 = vmatprep.subr.mxu0 0.0
      %486 = vmatpush1.xpose.msra.mxu0 0.0
      %487 = vmatprep.subr.mxu0 0.0
      %488 = vmatpush1.xpose.msra.mxu0 0.0
      %489 = vmatprep.subr.mxu0 0.0
      %490 = vmatpush1.xpose.msra.mxu0 0.0
      %491 = vmatprep.subr.mxu0 0.0
      %492 = vmatpush1.xpose.msra.mxu0 0.0
      %493 = vmatprep.subr.mxu0 0.0
      %494 = vmatpush1.xpose.msra.mxu0 0.0
      %495 = vmatprep.subr.mxu0 0.0
      %496 = vmatpush1.xpose.msra.mxu0 0.0
      %497 = vmatprep.subr.mxu0 0.0
      %498 = vmatpush1.xpose.msra.mxu0 0.0
      %499 = vmatprep.subr.mxu0 0.0
      %500 = vmatpush1.xpose.msra.mxu0 0.0
      %501 = vmatprep.subr.mxu0 0.0
      %502 = vmatpush1.xpose.msra.mxu0 0.0
      %503 = vmatprep.subr.mxu0 0.0
      %504 = vmatpush1.xpose.msra.mxu0 0.0
      %505 = vmatprep.subr.mxu0 0.0
      %506 = vmatpush1.xpose.msra.mxu0 0.0
      %507 = vmatprep.subr.mxu0 0.0
      %508 = vmatpush1.xpose.msra.mxu0 0.0
      %509 = vmatprep.subr.mxu0 0.0
      %510 = vmatpush1.xpose.msra.mxu0 0.0
      %511 = vmatprep.subr.mxu0 0.0
      %512 = vmatpush1.xpose.msra.mxu0 0.0
      %513 = vmatprep.subr.mxu0 0.0
      %514 = vmatpush1.xpose.msra.mxu0 0.0
      %515 = vmatprep.subr.mxu0 0.0
      %516 = vmatpush1.xpose.msra.mxu0 0.0
      %517 = vmatprep.subr.mxu0 0.0
      %518 = vmatpush1.xpose.msra.mxu0 0.0
      %519 = vmatprep.subr.mxu0 0.0
      %520 = vmatpush1.xpose.msra.mxu0 0.0
      %521 = vmatprep.subr.mxu0 0.0
      %522 = vmatpush1.xpose.msra.mxu0 0.0
      %523 = vmatprep.subr.mxu0 0.0
      %524 = vmatpush1.xpose.msra.mxu0 0.0
      %525 = vmatprep.subr.mxu0 0.0
      %526 = vmatpush1.xpose.msra.mxu0 0.0
      %527 = vmatprep.subr.mxu0 0.0
      %528 = vmatpush1.xpose.msra.mxu0 0.0
      %529 = vmatprep.subr.mxu0 0.0
      %530 = vmatpush1.xpose.msra.mxu0 0.0
      %531 = vmatprep.subr.mxu0 0.0
      %532 = vmatpush1.xpose.msra.mxu0 0.0
      %533 = vmatprep.subr.mxu0 0.0
      %534 = vmatpush1.xpose.msra.mxu0 0.0
      %535 = vmatprep.subr.mxu0 0.0
      %536 = vmatpush1.xpose.msra.mxu0 0.0
      %537 = vmatprep.subr.mxu0 0.0
      %538 = vmatpush1.xpose.msra.mxu0 0.0
      %539 = vmatprep.subr.mxu0 0.0
      %540 = vmatpush1.xpose.msra.mxu0 0.0
      %541 = vmatprep.subr.mxu0 0.0
      %542 = vmatpush1.xpose.msra.mxu0 0.0
      %543 = vmatprep.subr.mxu0 0.0
      %544 = vmatpush1.xpose.msra.mxu0 0.0
      %545 = vmatprep.subr.mxu0 0.0
      %546 = vmatpush1.xpose.msra.mxu0 0.0
      %547 = vmatprep.mubr.f32.mxu0 0.0
      %548 = vmatmul.mubr.f32.gmra.mrb[0].mxu0 %v479
      %v549 = vpop.f32.mrb[0].mxu0
      %v550 = vadd.f32 0.0, %v549
      %v551 = vpop.f32.mrb[0].mxu0
      %552 = vdwg.mxu0
      %v553 = vmul.f32 %v550, 0.35355338
      %v554 = vadd.f32 %v553, %v140
      %v555 = vsel %vm144, %v554, -inf
      %556 = vmax.xlane.f32.xlu0 %v555
      %v557 = vpop.xlane.xlu0 %556
      %v558 = vsub.f32 %v554, %v557
      %v559 = vmul.f32 %v558, 1.442695
      %v560 = vpow.pop %v559
      %v561 = vsel %vm144, %v560, 0.0
      %562 = vadd.xlane.f32.xlu0 %v561
      %v563 = vpop.xlane.xlu0 %562
      %v564 = vrcp.pop %v563
      %565 = vrot.lane.b32.xlu0 %v139, 48
      %v566 = vpop.permute.xlu0 %565
      %v569 = vsel %vm144, %v560, 0
      %571 = vmatprep.subr.mxu0 0.0
      %572 = vmatpush1.msra.mxu0 %v566
      %573 = vmatprep.subr.mxu0 0.0
      %574 = vmatpush1.msra.mxu0 0.0
      %575 = vmatprep.subr.mxu0 0.0
      %576 = vmatpush1.msra.mxu0 0.0
      %577 = vmatprep.subr.mxu0 0.0
      %578 = vmatpush1.msra.mxu0 0.0
      %579 = vmatprep.subr.mxu0 0.0
      %580 = vmatpush1.msra.mxu0 0.0
      %581 = vmatprep.subr.mxu0 0.0
      %582 = vmatpush1.msra.mxu0 0.0
      %583 = vmatprep.subr.mxu0 0.0
      %584 = vmatpush1.msra.mxu0 0.0
      %585 = vmatprep.subr.mxu0 0.0
      %586 = vmatpush1.msra.mxu0 0.0
      %587 = vmatprep.subr.mxu0 0.0
      %588 = vmatpush1.msra.mxu0 0.0
      %589 = vmatprep.subr.mxu0 0.0
      %590 = vmatpush1.msra.mxu0 0.0
      %591 = vmatprep.subr.mxu0 0.0
      %592 = vmatpush1.msra.mxu0 0.0
      %593 = vmatprep.subr.mxu0 0.0
      %594 = vmatpush1.msra.mxu0 0.0
      %595 = vmatprep.subr.mxu0 0.0
      %596 = vmatpush1.msra.mxu0 0.0
      %597 = vmatprep.subr.mxu0 0.0
      %598 = vmatpush1.msra.mxu0 0.0
      %599 = vmatprep.subr.mxu0 0.0
      %600 = vmatpush1.msra.mxu0 0.0
      %601 = vmatprep.subr.mxu0 0.0
      %602 = vmatpush1.msra.mxu0 0.0
      %603 = vmatprep.subr.mxu0 0.0
      %604 = vmatpush1.msra.mxu0 0.0
      %605 = vmatprep.subr.mxu0 0.0
      %606 = vmatpush1.msra.mxu0 0.0
      %607 = vmatprep.subr.mxu0 0.0
      %608 = vmatpush1.msra.mxu0 0.0
      %609 = vmatprep.subr.mxu0 0.0
      %610 = vmatpush1.msra.mxu0 0.0
      %611 = vmatprep.subr.mxu0 0.0
      %612 = vmatpush1.msra.mxu0 0.0
      %613 = vmatprep.subr.mxu0 0.0
      %614 = vmatpush1.msra.mxu0 0.0
      %615 = vmatprep.subr.mxu0 0.0
      %616 = vmatpush1.msra.mxu0 0.0
      %617 = vmatprep.subr.mxu0 0.0
      %618 = vmatpush1.msra.mxu0 0.0
      %619 = vmatprep.subr.mxu0 0.0
      %620 = vmatpush1.msra.mxu0 0.0
      %621 = vmatprep.subr.mxu0 0.0
      %622 = vmatpush1.msra.mxu0 0.0
      %623 = vmatprep.subr.mxu0 0.0
      %624 = vmatpush1.msra.mxu0 0.0
      %625 = vmatprep.subr.mxu0 0.0
      %626 = vmatpush1.msra.mxu0 0.0
      %627 = vmatprep.subr.mxu0 0.0
      %628 = vmatpush1.msra.mxu0 0.0
      %629 = vmatprep.subr.mxu0 0.0
      %630 = vmatpush1.msra.mxu0 0.0
      %631 = vmatprep.subr.mxu0 0.0
      %632 = vmatpush1.msra.mxu0 0.0
      %633 = vmatprep.subr.mxu0 0.0
      %634 = vmatpush1.msra.mxu0 0.0
      %635 = vmatprep.mubr.f32.mxu0 0.0
      %636 = vmatmul.mubr.f32.gmra.mrb[0].mxu0 %v569
      %v637 = vpop.f32.mrb[0].mxu0
      %v638 = vadd.f32 0.0, %v637
      %v639 = vpop.f32.mrb[0].mxu0
      %640 = vdwg.mxu0
      %v641 = vmul.f32 %v638, %v564
      %642 = vrot.lane.b32.xlu0 %v139, 104
      %v643 = vpop.permute.xlu0 %642
      %644 = vrot.lane.b32.xlu0 %v139, 72
      %v645 = vpop.permute.xlu0 %644
      %v646 = vsel %vm144, %v643, 0
      %v648 = vsel %vm144, %v645, 0
      %650 = vmatprep.subr.mxu0 0.0
      %651 = vmatpush1.xpose.msra.mxu0 %v648
      %652 = vmatprep.subr.mxu0 0.0
      %653 = vmatpush1.xpose.msra.mxu0 0.0
      %654 = vmatprep.subr.mxu0 0.0
      %655 = vmatpush1.xpose.msra.mxu0 0.0
      %656 = vmatprep.subr.mxu0 0.0
      %657 = vmatpush1.xpose.msra.mxu0 0.0
      %658 = vmatprep.subr.mxu0 0.0
      %659 = vmatpush1.xpose.msra.mxu0 0.0
      %660 = vmatprep.subr.mxu0 0.0
      %661 = vmatpush1.xpose.msra.mxu0 0.0
      %662 = vmatprep.subr.mxu0 0.0
      %663 = vmatpush1.xpose.msra.mxu0 0.0
      %664 = vmatprep.subr.mxu0 0.0
      %665 = vmatpush1.xpose.msra.mxu0 0.0
      %666 = vmatprep.subr.mxu0 0.0
      %667 = vmatpush1.xpose.msra.mxu0 0.0
      %668 = vmatprep.subr.mxu0 0.0
      %669 = vmatpush1.xpose.msra.mxu0 0.0
      %670 = vmatprep.subr.mxu0 0.0
      %671 = vmatpush1.xpose.msra.mxu0 0.0
      %672 = vmatprep.subr.mxu0 0.0
      %673 = vmatpush1.xpose.msra.mxu0 0.0
      %674 = vmatprep.subr.mxu0 0.0
      %675 = vmatpush1.xpose.msra.mxu0 0.0
      %676 = vmatprep.subr.mxu0 0.0
      %677 = vmatpush1.xpose.msra.mxu0 0.0
      %678 = vmatprep.subr.mxu0 0.0
      %679 = vmatpush1.xpose.msra.mxu0 0.0
      %680 = vmatprep.subr.mxu0 0.0
      %681 = vmatpush1.xpose.msra.mxu0 0.0
      %682 = vmatprep.subr.mxu0 0.0
      %683 = vmatpush1.xpose.msra.mxu0 0.0
      %684 = vmatprep.subr.mxu0 0.0
      %685 = vmatpush1.xpose.msra.mxu0 0.0
      %686 = vmatprep.subr.mxu0 0.0
      %687 = vmatpush1.xpose.msra.mxu0 0.0
      %688 = vmatprep.subr.mxu0 0.0
      %689 = vmatpush1.xpose.msra.mxu0 0.0
      %690 = vmatprep.subr.mxu0 0.0
      %691 = vmatpush1.xpose.msra.mxu0 0.0
      %692 = vmatprep.subr.mxu0 0.0
      %693 = vmatpush1.xpose.msra.mxu0 0.0
      %694 = vmatprep.subr.mxu0 0.0
      %695 = vmatpush1.xpose.msra.mxu0 0.0
      %696 = vmatprep.subr.mxu0 0.0
      %697 = vmatpush1.xpose.msra.mxu0 0.0
      %698 = vmatprep.subr.mxu0 0.0
      %699 = vmatpush1.xpose.msra.mxu0 0.0
      %700 = vmatprep.subr.mxu0 0.0
      %701 = vmatpush1.xpose.msra.mxu0 0.0
      %702 = vmatprep.subr.mxu0 0.0
      %703 = vmatpush1.xpose.msra.mxu0 0.0
      %704 = vmatprep.subr.mxu0 0.0
      %705 = vmatpush1.xpose.msra.mxu0 0.0
      %706 = vmatprep.subr.mxu0 0.0
      %707 = vmatpush1.xpose.msra.mxu0 0.0
      %708 = vmatprep.subr.mxu0 0.0
      %709 = vmatpush1.xpose.msra.mxu0 0.0
      %710 = vmatprep.subr.mxu0 0.0
      %711 = vmatpush1.xpose.msra.mxu0 0.0
      %712 = vmatprep.subr.mxu0 0.0
      %713 = vmatpush1.xpose.msra.mxu0 0.0
      %714 = vmatprep.mubr.f32.mxu0 0.0
      %715 = vmatmul.mubr.f32.gmra.mrb[0].mxu0 %v646
      %v716 = vpop.f32.mrb[0].mxu0
      %v717 = vadd.f32 0.0, %v716
      %v718 = vpop.f32.mrb[0].mxu0
      %719 = vdwg.mxu0
      %v720 = vmul.f32 %v717, 0.35355338
      %v721 = vadd.f32 %v720, %v140
      %v722 = vsel %vm144, %v721, -inf
      %723 = vmax.xlane.f32.xlu0 %v722
      %v724 = vpop.xlane.xlu0 %723
      %v725 = vsub.f32 %v721, %v724
      %v726 = vmul.f32 %v725, 1.442695
      %v727 = vpow.pop %v726
      %v728 = vsel %vm144, %v727, 0.0
      %729 = vadd.xlane.f32.xlu0 %v728
      %v730 = vpop.xlane.xlu0 %729
      %v731 = vrcp.pop %v730
      %732 = vrot.lane.b32.xlu0 %v139, 40
      %v733 = vpop.permute.xlu0 %732
      %v736 = vsel %vm144, %v727, 0
      %738 = vmatprep.subr.mxu0 0.0
      %739 = vmatpush1.msra.mxu0 %v733
      %740 = vmatprep.subr.mxu0 0.0
      %741 = vmatpush1.msra.mxu0 0.0
      %742 = vmatprep.subr.mxu0 0.0
      %743 = vmatpush1.msra.mxu0 0.0
      %744 = vmatprep.subr.mxu0 0.0
      %745 = vmatpush1.msra.mxu0 0.0
      %746 = vmatprep.subr.mxu0 0.0
      %747 = vmatpush1.msra.mxu0 0.0
      %748 = vmatprep.subr.mxu0 0.0
      %749 = vmatpush1.msra.mxu0 0.0
      %750 = vmatprep.subr.mxu0 0.0
      %751 = vmatpush1.msra.mxu0 0.0
      %752 = vmatprep.subr.mxu0 0.0
      %753 = vmatpush1.msra.mxu0 0.0
      %754 = vmatprep.subr.mxu0 0.0
      %755 = vmatpush1.msra.mxu0 0.0
      %756 = vmatprep.subr.mxu0 0.0
      %757 = vmatpush1.msra.mxu0 0.0
      %758 = vmatprep.subr.mxu0 0.0
      %759 = vmatpush1.msra.mxu0 0.0
      %760 = vmatprep.subr.mxu0 0.0
      %761 = vmatpush1.msra.mxu0 0.0
      %762 = vmatprep.subr.mxu0 0.0
      %763 = vmatpush1.msra.mxu0 0.0
      %764 = vmatprep.subr.mxu0 0.0
      %765 = vmatpush1.msra.mxu0 0.0
      %766 = vmatprep.subr.mxu0 0.0
      %767 = vmatpush1.msra.mxu0 0.0
      %768 = vmatprep.subr.mxu0 0.0
      %769 = vmatpush1.msra.mxu0 0.0
      %770 = vmatprep.subr.mxu0 0.0
      %771 = vmatpush1.msra.mxu0 0.0
      %772 = vmatprep.subr.mxu0 0.0
      %773 = vmatpush1.msra.mxu0 0.0
      %774 = vmatprep.subr.mxu0 0.0
      %775 = vmatpush1.msra.mxu0 0.0
      %776 = vmatprep.subr.mxu0 0.0
      %777 = vmatpush1.msra.mxu0 0.0
      %778 = vmatprep.subr.mxu0 0.0
      %779 = vmatpush1.msra.mxu0 0.0
      %780 = vmatprep.subr.mxu0 0.0
      %781 = vmatpush1.msra.mxu0 0.0
      %782 = vmatprep.subr.mxu0 0.0
      %783 = vmatpush1.msra.mxu0 0.0
      %784 = vmatprep.subr.mxu0 0.0
      %785 = vmatpush1.msra.mxu0 0.0
      %786 = vmatprep.subr.mxu0 0.0
      %787 = vmatpush1.msra.mxu0 0.0
      %788 = vmatprep.subr.mxu0 0.0
      %789 = vmatpush1.msra.mxu0 0.0
      %790 = vmatprep.subr.mxu0 0.0
      %791 = vmatpush1.msra.mxu0 0.0
      %792 = vmatprep.subr.mxu0 0.0
      %793 = vmatpush1.msra.mxu0 0.0
      %794 = vmatprep.subr.mxu0 0.0
      %795 = vmatpush1.msra.mxu0 0.0
      %796 = vmatprep.subr.mxu0 0.0
      %797 = vmatpush1.msra.mxu0 0.0
      %798 = vmatprep.subr.mxu0 0.0
      %799 = vmatpush1.msra.mxu0 0.0
      %800 = vmatprep.subr.mxu0 0.0
      %801 = vmatpush1.msra.mxu0 0.0
      %802 = vmatprep.mubr.f32.mxu0 0.0
      %803 = vmatmul.mubr.f32.gmra.mrb[0].mxu0 %v736
      %v804 = vpop.f32.mrb[0].mxu0
      %v805 = vadd.f32 0.0, %v804
      %v806 = vpop.f32.mrb[0].mxu0
      %807 = vdwg.mxu0
      %v808 = vmul.f32 %v805, %v731
      %810 = vrot.lane.b32.xlu0 %v474, 8
      %v811 = vpop.permute.xlu0 %810
      %814 = vrot.lane.b32.xlu0 %v641, 16
      %v815 = vpop.permute.xlu0 %814
      %818 = vrot.lane.b32.xlu0 %v808, 24
      %v819 = vpop.permute.xlu0 %818
      %v821 = vsel %vm144, %v307, %v811
      %vm822 = vcmask 130048
      %v823 = vsel %vm822, %v821, %v815
      %vm824 = vcmask 195584
      %v825 = vsel %vm824, %v823, %v819
      %vm826 = vcmask 261120
      %827 = vst.msk [vmem:[%s138] sm:$0xff] %vm826, %v825
      %p828 = scmp.lt.s32.totalorder %s13, 1
      %s829 = scalar_select %p828, %s13, 1
      %s830 = smul.addr %s829, 8
      %s831 = scalar_lea.vmem %s2, %s830
      // Predicated region
      $region29: #{decoder_layer.9} parent=27 // pred_check
        %p832 = pneg %p78
      $region30: #{decoder_layer.9} parent=27 // pred_check_branch
        %834 = sbr.rel (%p832) target = $region32
      $region31: #{decoder_layer.9} parent=27 // pred_region
        _
      $region32: #{decoder_layer.9} parent=27 // pred_fallthru
        _
    $region28: #{decoder_layer.9} parent=5 // pred_fallthru
      _
    %p835 = scmp.le.s32.totalorder 2, %s8
    // Predicated region
    $region33: #{decoder_layer.9} parent=5 // pred_check
      %p836 = pneg %p835
    $region34: #{decoder_layer.9} parent=5 // pred_check_branch
      %838 = sbr.rel (%p836) target = $region36
    $region35: #{decoder_layer.9} parent=5 // pred_region
      %s839 = ssub.s32 %s8, 2
      // Predicated region
      $region37: #{decoder_layer.9} parent=35 // pred_check
        %p840 = pneg %p84
      $region38: #{decoder_layer.9} parent=35 // pred_check_branch
        %842 = sbr.rel (%p840) target = $region40
      $region39: #{decoder_layer.9} parent=35 // pred_region
        %p843 = scmp.lt.s32.totalorder %s14, 1
        %s844 = scalar_select %p843, %s14, 1
        %s845 = smul.addr %s844, 8
        %s846 = scalar_lea.vmem %s2, %s845
      $region40: #{decoder_layer.9} parent=35 // pred_fallthru
        _
    $region36: #{decoder_layer.9} parent=5 // pred_fallthru
      _
  $region6: #{decoder_layer.9} parent=0 // loop_footer
    %s12 = sadd.s32 1, %s8
  $region7: #{decoder_layer.9} parent=0 // loop_footer_branch
    %7 = sbr.rel target = $region3
  $region8: #{decoder_layer.9} parent=0 // loop_exit
    _

// kernel: decoder_layer.10
$region0: #{decoder_layer.10}
  #allocation0 [shape = 'u32[]', space=smem, size = 0x4, offset = 0x4, fixed_abs, tag = 'smem constant byte address 0x4 - core index']
  #allocation1 [shape = 'u32[144,128]{1,0:T(1,128)}', space=vmem, size = 0x12000, scoped, tag = 'internal scratch']
  #allocation2 [shape = 'f32[16,32]{1,0:T(8,128)}', space=vmem, size = 0x2000, scoped, tag = 'scratch operand']
  %s0 = inlined_call_operand.vmem [shape: f32[16,32], index: 0, kind: input, shape index: {}]
  %s1 = inlined_call_operand.vmem [shape: f32[32,32], index: 1, kind: input, shape index: {}]
  %s2 = inlined_call_operand.vmem [shape: f32[1,32], index: 2, kind: input, shape index: {}]
  %s3 = inlined_call_operand.vmem [shape: f32[16,32], index: 3, kind: input, shape index: {}]
  %s4 = inlined_call_operand.vmem [shape: f32[16,32], index: 4, kind: output, shape index: {}]
  %s5 = sld [smem:[#allocation0]]
  $region34: #{decoder_layer.10} parent=0
    _
  %s7 = ssub.s32 1, %s5
  %s8 = scalar_select 0, %s7, %s5
  // Predicated region
  $region2: #{decoder_layer.10} parent=0 // pred_check
    _
  $region3: #{decoder_layer.10} parent=0 // pred_check_branch
    %10 = sbr.rel (0) target = $region5
  $region4: #{decoder_layer.10} parent=0 // pred_region
    _
  $region5: #{decoder_layer.10} parent=0 // pred_fallthru
    _
  // Predicated region
  $region6: #{decoder_layer.10} parent=0 // pred_check
    _
  $region7: #{decoder_layer.10} parent=0 // pred_check_branch
    %12 = sbr.rel (0) target = $region9
  $region8: #{decoder_layer.10} parent=0 // pred_region
    _
  $region9: #{decoder_layer.10} parent=0 // pred_fallthru
    _
  // Predicated region
  $region10: #{decoder_layer.10} parent=0 // pred_check
    _
  $region11: #{decoder_layer.10} parent=0 // pred_check_branch
    %14 = sbr.rel (0) target = $region13
  $region12: #{decoder_layer.10} parent=0 // pred_region
    _
  $region13: #{decoder_layer.10} parent=0 // pred_fallthru
    _
  // Predicated region
  $region14: #{decoder_layer.10} parent=0 // pred_check
    _
  $region15: #{decoder_layer.10} parent=0 // pred_check_branch
    %16 = sbr.rel (0) target = $region17
  $region16: #{decoder_layer.10} parent=0 // pred_region
    _
  $region17: #{decoder_layer.10} parent=0 // pred_fallthru
    _
  %p17 = scmp.eq.s32.totalorder 0, 0
  // Predicated region
  $region18: #{decoder_layer.10} parent=0 // pred_check
    %p18 = pneg %p17
  $region19: #{decoder_layer.10} parent=0 // pred_check_branch
    %20 = sbr.rel (%p18) target = $region21
  $region20: #{decoder_layer.10} parent=0 // pred_region
    %vm21 = vcmask 261120
    %22 = vst.msk [vmem:[#allocation2] sm:$0xff] %vm21, 0.0
    %23 = vst.msk [vmem:[#allocation2 + $0x8] sm:$0xff] %vm21, 0.0
  $region21: #{decoder_layer.10} parent=0 // pred_fallthru
    _
  %v24 = vld [vmem:[#allocation2] sm:$0xff]
  %v25 = vld [vmem:[#allocation2 + $0x8] sm:$0xff]
  %v26 = vld [vmem:[%s0] sm:$0xff]
  %v27 = vld [vmem:[%s0 + $0x8] sm:$0xff]
  %v28 = vld [vmem:[%s1] sm:$0xff]
  %v29 = vld [vmem:[%s1 + $0x8] sm:$0xff]
  %v30 = vld [vmem:[%s1 + $0x10] sm:$0xff]
  %v31 = vld [vmem:[%s1 + $0x18] sm:$0xff]
  %vm32 = vcmask 261120
  %v34 = vsel %vm32, %v26, 0
  %v37 = vsel %vm32, %v27, 0
  %39 = vmatprep.subr.mxu0 0.0
  %40 = vmatpush1.msra.mxu0 %v28
  %41 = vmatprep.subr.mxu0 0.0
  %42 = vmatpush1.msra.mxu0 %v29
  %43 = vmatprep.subr.mxu0 0.0
  %44 = vmatpush1.msra.mxu0 %v30
  %45 = vmatprep.subr.mxu0 0.0
  %46 = vmatpush1.msra.mxu0 %v31
  %47 = vmatprep.subr.mxu0 0.0
  %48 = vmatpush1.msra.mxu0 0.0
  %49 = vmatprep.subr.mxu0 0.0
  %50 = vmatpush1.msra.mxu0 0.0
  %51 = vmatprep.subr.mxu0 0.0
  %52 = vmatpush1.msra.mxu0 0.0
  %53 = vmatprep.subr.mxu0 0.0
  %54 = vmatpush1.msra.mxu0 0.0
  %55 = vmatprep.subr.mxu0 0.0
  %56 = vmatpush1.msra.mxu0 0.0
  %57 = vmatprep.subr.mxu0 0.0
  %58 = vmatpush1.msra.mxu0 0.0
  %59 = vmatprep.subr.mxu0 0.0
  %60 = vmatpush1.msra.mxu0 0.0
  %61 = vmatprep.subr.mxu0 0.0
  %62 = vmatpush1.msra.mxu0 0.0
  %63 = vmatprep.subr.mxu0 0.0
  %64 = vmatpush1.msra.mxu0 0.0
  %65 = vmatprep.subr.mxu0 0.0
  %66 = vmatpush1.msra.mxu0 0.0
  %67 = vmatprep.subr.mxu0 0.0
  %68 = vmatpush1.msra.mxu0 0.0
  %69 = vmatprep.subr.mxu0 0.0
  %70 = vmatpush1.msra.mxu0 0.0
  %71 = vmatprep.subr.mxu0 0.0
  %72 = vmatpush1.msra.mxu0 0.0
  %73 = vmatprep.subr.mxu0 0.0
  %74 = vmatpush1.msra.mxu0 0.0
  %75 = vmatprep.subr.mxu0 0.0
  %76 = vmatpush1.msra.mxu0 0.0
  %77 = vmatprep.subr.mxu0 0.0
  %78 = vmatpush1.msra.mxu0 0.0
  %79 = vmatprep.subr.mxu0 0.0
  %80 = vmatpush1.msra.mxu0 0.0
  %81 = vmatprep.subr.mxu0 0.0
  %82 = vmatpush1.msra.mxu0 0.0
  %83 = vmatprep.subr.mxu0 0.0
  %84 = vmatpush1.msra.mxu0 0.0
  %85 = vmatprep.subr.mxu0 0.0
  %86 = vmatpush1.msra.mxu0 0.0
  %87 = vmatprep.subr.mxu0 0.0
  %88 = vmatpush1.msra.mxu0 0.0
  %89 = vmatprep.subr.mxu0 0.0
  %90 = vmatpush1.msra.mxu0 0.0
  %91 = vmatprep.subr.mxu0 0.0
  %92 = vmatpush1.msra.mxu0 0.0
  %93 = vmatprep.subr.mxu0 0.0
  %94 = vmatpush1.msra.mxu0 0.0
  %95 = vmatprep.subr.mxu0 0.0
  %96 = vmatpush1.msra.mxu0 0.0
  %97 = vmatprep.subr.mxu0 0.0
  %98 = vmatpush1.msra.mxu0 0.0
  %99 = vmatprep.subr.mxu0 0.0
  %100 = vmatpush1.msra.mxu0 0.0
  %101 = vmatprep.subr.mxu0 0.0
  %102 = vmatpush1.msra.mxu0 0.0
  %103 = vmatprep.mubr.f32.mxu0 0.0
  %104 = vmatmul.mubr.f32.gmra.mrb[0].mxu0 %v34
  %v105 = vpop.f32.mrb[0].mxu0
  %v106 = vadd.f32 0.0, %v105
  %v107 = vpop.f32.mrb[0].mxu0
  %108 = vmatprep.mubr.f32.mxu0 0.0
  %109 = vmatmul.mubr.f32.gmra.mrb[0].mxu0 %v37
  %v110 = vpop.f32.mrb[0].mxu0
  %v111 = vadd.f32 0.0, %v110
  %v112 = vpop.f32.mrb[0].mxu0
  %113 = vdwg.mxu0
  %v114 = vadd.f32 %v24, %v106
  %v115 = vadd.f32 %v25, %v111
  %116 = vst.msk [vmem:[#allocation2] sm:$0xff] %vm32, %v114
  %117 = vst.msk [vmem:[#allocation2 + $0x8] sm:$0xff] %vm32, %v115
  // Predicated region
  $region22: #{decoder_layer.10} parent=0 // pred_check
    %p118 = pneg %p17
  $region23: #{decoder_layer.10} parent=0 // pred_check_branch
    %120 = sbr.rel (%p118) target = $region25
  $region24: #{decoder_layer.10} parent=0 // pred_region
    %v121 = vld [vmem:[#allocation2] sm:$0xff]
    %v122 = vld [vmem:[#allocation2 + $0x8] sm:$0xff]
    %v123 = vld [vmem:[%s2] sm:$0x1]
    %v125 = vlaneseq
    %v126 = vshrl.u32 %v125, 7
    %v127 = vsub.s32 0, %v126
    %v128 = vrot.slane %v123, %v127
    %v130 = vadd.f32 %v121, %v128
    %v131 = vadd.f32 %v122, %v128
    %v132 = vld [vmem:[%s3] sm:$0xff]
    %v133 = vld [vmem:[%s3 + $0x8] sm:$0xff]
    %v134 = vadd.f32 %v130, %v132
    %v135 = vadd.f32 %v131, %v133
    %136 = vst.msk [vmem:[%s4] sm:$0xff] %vm32, %v134
    %137 = vst.msk [vmem:[%s4 + $0x8] sm:$0xff] %vm32, %v135
  $region25: #{decoder_layer.10} parent=0 // pred_fallthru
    _
  // Predicated region
  $region26: #{decoder_layer.10} parent=0 // pred_check
    _
  $region27: #{decoder_layer.10} parent=0 // pred_check_branch
    %139 = sbr.rel (0) target = $region29
  $region28: #{decoder_layer.10} parent=0 // pred_region
    _
  $region29: #{decoder_layer.10} parent=0 // pred_fallthru
    _
  // Predicated region
  $region30: #{decoder_layer.10} parent=0 // pred_check
    _
  $region31: #{decoder_layer.10} parent=0 // pred_check_branch
    %141 = sbr.rel (0) target = $region33
  $region32: #{decoder_layer.10} parent=0 // pred_region
    _
  $region33: #{decoder_layer.10} parent=0 // pred_fallthru
    _

// kernel: decoder_layer.15
$region0: #{decoder_layer.15}
  #allocation0 [shape = 'u32[]', space=smem, size = 0x4, offset = 0x4, fixed_abs, tag = 'smem constant byte address 0x4 - core index']
  #allocation1 [shape = 'u32[144,128]{1,0:T(1,128)}', space=vmem, size = 0x12000, scoped, tag = 'internal scratch']
  #allocation2 [shape = 'f32[16,32]{1,0:T(8,128)}', space=vmem, size = 0x2000, scoped, tag = 'scratch operand']
  %s0 = inlined_call_operand.vmem [shape: f32[16,64], index: 0, kind: input, shape index: {}]
  %s1 = inlined_call_operand.vmem [shape: f32[64,32], index: 1, kind: input, shape index: {}]
  %s2 = inlined_call_operand.vmem [shape: f32[1,32], index: 2, kind: input, shape index: {}]
  %s3 = inlined_call_operand.vmem [shape: f32[16,32], index: 3, kind: input, shape index: {}]
  %s4 = inlined_call_operand.vmem [shape: f32[16,32], index: 4, kind: output, shape index: {}]
  %s5 = sld [smem:[#allocation0]]
  $region34: #{decoder_layer.15} parent=0
    _
  %s7 = ssub.s32 1, %s5
  %s8 = scalar_select 0, %s7, %s5
  // Predicated region
  $region2: #{decoder_layer.15} parent=0 // pred_check
    _
  $region3: #{decoder_layer.15} parent=0 // pred_check_branch
    %10 = sbr.rel (0) target = $region5
  $region4: #{decoder_layer.15} parent=0 // pred_region
    _
  $region5: #{decoder_layer.15} parent=0 // pred_fallthru
    _
  // Predicated region
  $region6: #{decoder_layer.15} parent=0 // pred_check
    _
  $region7: #{decoder_layer.15} parent=0 // pred_check_branch
    %12 = sbr.rel (0) target = $region9
  $region8: #{decoder_layer.15} parent=0 // pred_region
    _
  $region9: #{decoder_layer.15} parent=0 // pred_fallthru
    _
  // Predicated region
  $region10: #{decoder_layer.15} parent=0 // pred_check
    _
  $region11: #{decoder_layer.15} parent=0 // pred_check_branch
    %14 = sbr.rel (0) target = $region13
  $region12: #{decoder_layer.15} parent=0 // pred_region
    _
  $region13: #{decoder_layer.15} parent=0 // pred_fallthru
    _
  // Predicated region
  $region14: #{decoder_layer.15} parent=0 // pred_check
    _
  $region15: #{decoder_layer.15} parent=0 // pred_check_branch
    %16 = sbr.rel (0) target = $region17
  $region16: #{decoder_layer.15} parent=0 // pred_region
    _
  $region17: #{decoder_layer.15} parent=0 // pred_fallthru
    _
  %p17 = scmp.eq.s32.totalorder 0, 0
  // Predicated region
  $region18: #{decoder_layer.15} parent=0 // pred_check
    %p18 = pneg %p17
  $region19: #{decoder_layer.15} parent=0 // pred_check_branch
    %20 = sbr.rel (%p18) target = $region21
  $region20: #{decoder_layer.15} parent=0 // pred_region
    %vm21 = vcmask 261120
    %22 = vst.msk [vmem:[#allocation2] sm:$0xff] %vm21, 0.0
    %23 = vst.msk [vmem:[#allocation2 + $0x8] sm:$0xff] %vm21, 0.0
  $region21: #{decoder_layer.15} parent=0 // pred_fallthru
    _
  %v24 = vld [vmem:[#allocation2] sm:$0xff]
  %v25 = vld [vmem:[#allocation2 + $0x8] sm:$0xff]
  %v26 = vld [vmem:[%s0] sm:$0xff]
  %v27 = vld [vmem:[%s0 + $0x8] sm:$0xff]
  %v28 = vld [vmem:[%s1] sm:$0xff]
  %v29 = vld [vmem:[%s1 + $0x8] sm:$0xff]
  %v30 = vld [vmem:[%s1 + $0x10] sm:$0xff]
  %v31 = vld [vmem:[%s1 + $0x18] sm:$0xff]
  %v32 = vld [vmem:[%s1 + $0x20] sm:$0xff]
  %v33 = vld [vmem:[%s1 + $0x28] sm:$0xff]
  %v34 = vld [vmem:[%s1 + $0x30] sm:$0xff]
  %v35 = vld [vmem:[%s1 + $0x38] sm:$0xff]
  %vm36 = vcmask 523264
  %v38 = vsel %vm36, %v26, 0
  %v41 = vsel %vm36, %v27, 0
  %43 = vmatprep.subr.mxu0 0.0
  %44 = vmatpush1.msra.mxu0 %v28
  %45 = vmatprep.subr.mxu0 0.0
  %46 = vmatpush1.msra.mxu0 %v29
  %47 = vmatprep.subr.mxu0 0.0
  %48 = vmatpush1.msra.mxu0 %v30
  %49 = vmatprep.subr.mxu0 0.0
  %50 = vmatpush1.msra.mxu0 %v31
  %51 = vmatprep.subr.mxu0 0.0
  %52 = vmatpush1.msra.mxu0 %v32
  %53 = vmatprep.subr.mxu0 0.0
  %54 = vmatpush1.msra.mxu0 %v33
  %55 = vmatprep.subr.mxu0 0.0
  %56 = vmatpush1.msra.mxu0 %v34
  %57 = vmatprep.subr.mxu0 0.0
  %58 = vmatpush1.msra.mxu0 %v35
  %59 = vmatprep.subr.mxu0 0.0
  %60 = vmatpush1.msra.mxu0 0.0
  %61 = vmatprep.subr.mxu0 0.0
  %62 = vmatpush1.msra.mxu0 0.0
  %63 = vmatprep.subr.mxu0 0.0
  %64 = vmatpush1.msra.mxu0 0.0
  %65 = vmatprep.subr.mxu0 0.0
  %66 = vmatpush1.msra.mxu0 0.0
  %67 = vmatprep.subr.mxu0 0.0
  %68 = vmatpush1.msra.mxu0 0.0
  %69 = vmatprep.subr.mxu0 0.0
  %70 = vmatpush1.msra.mxu0 0.0
  %71 = vmatprep.subr.mxu0 0.0
  %72 = vmatpush1.msra.mxu0 0.0
  %73 = vmatprep.subr.mxu0 0.0
  %74 = vmatpush1.msra.mxu0 0.0
  %75 = vmatprep.subr.mxu0 0.0
  %76 = vmatpush1.msra.mxu0 0.0
  %77 = vmatprep.subr.mxu0 0.0
  %78 = vmatpush1.msra.mxu0 0.0
  %79 = vmatprep.subr.mxu0 0.0
  %80 = vmatpush1.msra.mxu0 0.0
  %81 = vmatprep.subr.mxu0 0.0
  %82 = vmatpush1.msra.mxu0 0.0
  %83 = vmatprep.subr.mxu0 0.0
  %84 = vmatpush1.msra.mxu0 0.0
  %85 = vmatprep.subr.mxu0 0.0
  %86 = vmatpush1.msra.mxu0 0.0
  %87 = vmatprep.subr.mxu0 0.0
  %88 = vmatpush1.msra.mxu0 0.0
  %89 = vmatprep.subr.mxu0 0.0
  %90 = vmatpush1.msra.mxu0 0.0
  %91 = vmatprep.subr.mxu0 0.0
  %92 = vmatpush1.msra.mxu0 0.0
  %93 = vmatprep.subr.mxu0 0.0
  %94 = vmatpush1.msra.mxu0 0.0
  %95 = vmatprep.subr.mxu0 0.0
  %96 = vmatpush1.msra.mxu0 0.0
  %97 = vmatprep.subr.mxu0 0.0
  %98 = vmatpush1.msra.mxu0 0.0
  %99 = vmatprep.subr.mxu0 0.0
  %100 = vmatpush1.msra.mxu0 0.0
  %101 = vmatprep.subr.mxu0 0.0
  %102 = vmatpush1.msra.mxu0 0.0
  %103 = vmatprep.subr.mxu0 0.0
  %104 = vmatpush1.msra.mxu0 0.0
  %105 = vmatprep.subr.mxu0 0.0
  %106 = vmatpush1.msra.mxu0 0.0
  %107 = vmatprep.mubr.f32.mxu0 0.0
  %108 = vmatmul.mubr.f32.gmra.mrb[0].mxu0 %v38
  %v109 = vpop.f32.mrb[0].mxu0
  %v110 = vadd.f32 0.0, %v109
  %v111 = vpop.f32.mrb[0].mxu0
  %112 = vmatprep.mubr.f32.mxu0 0.0
  %113 = vmatmul.mubr.f32.gmra.mrb[0].mxu0 %v41
  %v114 = vpop.f32.mrb[0].mxu0
  %v115 = vadd.f32 0.0, %v114
  %v116 = vpop.f32.mrb[0].mxu0
  %117 = vdwg.mxu0
  %v118 = vadd.f32 %v24, %v110
  %v119 = vadd.f32 %v25, %v115
  %vm120 = vcmask 261120
  %121 = vst.msk [vmem:[#allocation2] sm:$0xff] %vm120, %v118
  %122 = vst.msk [vmem:[#allocation2 + $0x8] sm:$0xff] %vm120, %v119
  // Predicated region
  $region22: #{decoder_layer.15} parent=0 // pred_check
    %p123 = pneg %p17
  $region23: #{decoder_layer.15} parent=0 // pred_check_branch
    %125 = sbr.rel (%p123) target = $region25
  $region24: #{decoder_layer.15} parent=0 // pred_region
    %v126 = vld [vmem:[#allocation2] sm:$0xff]
    %v127 = vld [vmem:[#allocation2 + $0x8] sm:$0xff]
    %v128 = vld [vmem:[%s2] sm:$0x1]
    %v130 = vlaneseq
    %v131 = vshrl.u32 %v130, 7
    %v132 = vsub.s32 0, %v131
    %v133 = vrot.slane %v128, %v132
    %v135 = vadd.f32 %v126, %v133
    %v136 = vadd.f32 %v127, %v133
    %v137 = vld [vmem:[%s3] sm:$0xff]
    %v138 = vld [vmem:[%s3 + $0x8] sm:$0xff]
    %v139 = vadd.f32 %v135, %v137
    %v140 = vadd.f32 %v136, %v138
    %141 = vst.msk [vmem:[%s4] sm:$0xff] %vm120, %v139
    %142 = vst.msk [vmem:[%s4 + $0x8] sm:$0xff] %vm120, %v140
  $region25: #{decoder_layer.15} parent=0 // pred_fallthru
    _
  // Predicated region
  $region26: #{decoder_layer.15} parent=0 // pred_check
    _
  $region27: #{decoder_layer.15} parent=0 // pred_check_branch
    %144 = sbr.rel (0) target = $region29
  $region28: #{decoder_layer.15} parent=0 // pred_region
    _
  $region29: #{decoder_layer.15} parent=0 // pred_fallthru
    _
  // Predicated region
  $region30: #{decoder_layer.15} parent=0 // pred_check
    _
  $region31: #{decoder_layer.15} parent=0 // pred_check_branch
    %146 = sbr.rel (0) target = $region33
  $region32: #{decoder_layer.15} parent=0 // pred_region
    _
  $region33: #{decoder_layer.15} parent=0 // pred_fallthru
    _

</llo_original>
